<compile_context>
chip_gen: v5e
topology: v5e:2x2
jax: 0.10.0
libtpu: 0.0.40
codegen_flags: <defaults>
</compile_context>

<pallas_src>
import functools
import math

import jax
import jax.numpy as jnp
from jax.experimental import pallas as pl
from jax.experimental.pallas import tpu as pltpu


# ---------------------------------------------------------------------------
# Fused RRDB kernel body: one grid step = one RDB applied to one batch tile.
# ---------------------------------------------------------------------------
def _rrdb_kernel(x_ref, w1_ref, w2_ref, w3_ref, w4_ref, w5_ref, b_ref,
                 mask_ref, o_ref, patch_ref, cur_ref, *, Cp, W, L):
    # x_ref:    (Cp, L)        RDB-chain input for this batch tile (f32)
    # wK_ref:   (Cp, kK*9*Cp)  conv weights, [group][tap][channel] columns
    # b_ref:    (5, Cp, 1)     biases (f32, zero-padded rows)
    # mask_ref: (9, 1, L)      0/1 validity mask per tap (virtual zero padding)
    # o_ref:    (1, Cp, L)     output block for RDB index r
    # patch_ref:(45*Cp, L)     incremental im2col buffer, groups = [c1,c2,c3,c4,cur]
    # cur_ref:  (Cp, L)        f32 carry of the RDB chain across r
    G = 9 * Cp                                    # patch rows per feature group
    r = pl.program_id(1)

    @pl.when(r == 0)
    def _():                                      # start of a new RDB chain
        cur_ref[...] = x_ref[...]

    cur = cur_ref[...]                            # (Cp, L) f32

    def append_patch(feat, group):
        # Append the 9 shifted/masked copies of `feat` into its patch group.
        base = group * G
        for t in range(9):
            dy, dx = t // 3 - 1, t % 3 - 1
            if dy == 0 and dx == 0:
                val = feat                        # center tap: no shift, all valid
            else:
                shift = (-(dy * W + dx)) % L      # static, non-negative
                # XLU lane rotation; mask zeroes out-of-image (and cross-image)
                # source positions introduced by the flat-axis roll.
                val = pltpu.roll(feat, shift, axis=1) * mask_ref[t]
            patch_ref[base + t * Cp:base + (t + 1) * Cp, :] = (
                val.astype(patch_ref.dtype))

    def conv(w_ref, layer, lo, hi):
        # (Cp, K) @ (K, L) on the MXU, f32 accumulation; bias + ReLU on f32 acc.
        acc = jnp.dot(w_ref[...], patch_ref[lo:hi, :],
                      preferred_element_type=jnp.float32)
        return jnp.maximum(acc + b_ref[layer], 0.0)

    append_patch(cur, 4)                          # RDB input lives in group slot 4
    c1 = conv(w1_ref, 0, 4 * G, 5 * G)
    append_patch(c1, 0)
    c2 = conv(w2_ref, 1, 0, 1 * G)
    append_patch(c2, 1)
    c3 = conv(w3_ref, 2, 0, 2 * G)                # reads [c1, c2]
    append_patch(c3, 2)
    c4 = conv(w4_ref, 3, 0, 3 * G)                # reads [c1, c2, c3]
    append_patch(c4, 3)
    gate = conv(w5_ref, 4, 0, 4 * G)              # reads [c1, c2, c3, c4]

    out = cur + gate                              # residual add (f32)
    cur_ref[...] = out                            # carry to next r
    o_ref[0] = out


# ---------------------------------------------------------------------------
# Wrapper: layout plumbing (transpose/pad/permute) + pallas_call
# ---------------------------------------------------------------------------
def _tap_masks(H, W):
    ii = jnp.arange(H, dtype=jnp.int32).reshape(H, 1)
    jj = jnp.arange(W, dtype=jnp.int32).reshape(1, W)
    out = []
    for ky in range(3):
        for kx in range(3):
            dy, dx = ky - 1, kx - 1
            valid = ((ii + dy >= 0) & (ii + dy < H) &
                     (jj + dx >= 0) & (jj + dx < W))
            out.append(valid.reshape(1, H * W).astype(jnp.float32))
    return jnp.stack(out, axis=0)                 # (9, 1, H*W)


def _prep_weight(w_oihw, C, Cp, dtype):
    # PyTorch OIHW (Cout, k*C, 3, 3) -> (Cp, k*9*Cp):
    #   * reverse the Cin concat groups (torch concatenates newest first, the
    #     stored patch groups are oldest first: [c1, c2, c3, c4]),
    #   * column order [group][tap][channel] to match the incremental patch,
    #   * zero-pad Cin per group and Cout to Cp (sublane alignment).
    cout, cin = w_oihw.shape[0], w_oihw.shape[1]
    k = cin // C
    w = w_oihw.reshape(cout, k, C, 3, 3)[:, ::-1]           # reverse groups
    w = jnp.transpose(w, (0, 1, 3, 4, 2))                   # (o, g, ky, kx, ci)
    w = jnp.pad(w, ((0, Cp - cout), (0, 0), (0, 0), (0, 0), (0, Cp - C)))
    return w.reshape(Cp, k * 9 * Cp).astype(dtype)


def rrdb_pallas(x_nchw, params, *, compute_dtype=jnp.bfloat16, b_tile=None):
    """Fused RRDB forward. x_nchw: (N, C, H, W); params: [(w_oihw, b)] * 5."""
    N, C, H, W = x_nchw.shape
    HW = H * W
    Cp = ((C + 7) // 8) * 8                       # sublane-aligned channel count
    assert HW % 128 == 0, "flattened spatial axis must be a multiple of 128"

    if b_tile is None:
        # Largest batch tile that still leaves >= 2 grid steps on the
        # 'parallel' axis (v7x megacore); single-TC chips just see a loop.
        b_tile = 1
        for d in range(N, 0, -1):
            if N % d == 0 and N // d >= 2:
                b_tile = d
                break
    n_steps = N // b_tile
    L = b_tile * HW                               # lane width per grid step

    # Activations: (N, C, H, W) -> (Cp, N*HW): channels on sublanes,
    # batch*spatial packed on lanes (wrapper-side layout plumbing only).
    x_cn = jnp.transpose(x_nchw.reshape(N, C, HW), (1, 0, 2)).reshape(C, N * HW)
    x_cn = jnp.pad(x_cn, ((0, Cp - C), (0, 0)))

    wks = [_prep_weight(w, C, Cp, compute_dtype) for (w, _) in params]
    b_all = jnp.stack([jnp.pad(b, (0, Cp - C)) for (_, b) in params], axis=0)
    b_all = b_all.reshape(5, Cp, 1).astype(jnp.float32)
    masks = jnp.tile(_tap_masks(H, W), (1, 1, b_tile))      # (9, 1, L)

    def const_spec(shape):
        nd = len(shape)
        return pl.BlockSpec(shape, lambda n, r, _nd=nd: (0,) * _nd)

    kernel = functools.partial(_rrdb_kernel, Cp=Cp, W=W, L=L)
    out = pl.pallas_call(
        kernel,
        out_shape=jax.ShapeDtypeStruct((3, Cp, N * HW), jnp.float32),
        grid=(n_steps, 3),                        # (batch tile, RDB index)
        in_specs=[
            pl.BlockSpec((Cp, L), lambda n, r: (0, n)),     # x (resident over r)
            const_spec(wks[0].shape),                       # w1
            const_spec(wks[1].shape),                       # w2
            const_spec(wks[2].shape),                       # w3
            const_spec(wks[3].shape),                       # w4
            const_spec(wks[4].shape),                       # w5
            const_spec((5, Cp, 1)),                         # biases
            const_spec((9, 1, L)),                          # tap masks
        ],
        out_specs=pl.BlockSpec((1, Cp, L), lambda n, r: (r, 0, n)),
        scratch_shapes=[
            pltpu.VMEM((45 * Cp, L), compute_dtype),        # incremental im2col
            pltpu.VMEM((Cp, L), jnp.float32),               # RDB carry (cur)
        ],
        compiler_params=pltpu.CompilerParams(
            dimension_semantics=("parallel", "arbitrary")),
    )(x_cn, *wks, b_all, masks)

    out = out.reshape(3, Cp, N, HW)[:, :C]        # drop channel padding
    out = jnp.transpose(out, (2, 0, 1, 3)).reshape(N, 3 * C, H, W)
    return out


# ---------------------------------------------------------------------------
# Parameter init (PyTorch Conv2d-like fan-in uniform, OIHW layout)
# ---------------------------------------------------------------------------
def _init_conv(key, cin, cout):
    kw, kb = jax.random.split(key)
    bound = 1.0 / math.sqrt(cin * 9)
    w = jax.random.uniform(kw, (cout, cin, 3, 3), jnp.float32, -bound, bound)
    b = jax.random.uniform(kb, (cout,), jnp.float32, -bound, bound)
    return w, b


def init_rdb_params(key, filters):
    keys = jax.random.split(key, 5)
    in_feats = [1 * filters, 1 * filters, 2 * filters, 3 * filters, 4 * filters]
    return [_init_conv(k, cin, filters) for k, cin in zip(keys, in_feats)]


# ---------------------------------------------------------------------------
# Pure-JAX reference (mirrors the PyTorch module exactly, NCHW).
# Note: per the provided spec, ReLU follows ALL five convs (including the gate
# conv), there is no 0.2 residual scaling, and the single RDB's weights are
# shared across the three applications, with the three outputs concatenated.
# ---------------------------------------------------------------------------
def _conv3x3_ref(x, w_oihw, b):
    y = jax.lax.conv_general_dilated(
        x, w_oihw, window_strides=(1, 1), padding="SAME",
        dimension_numbers=("NCHW", "OIHW", "NCHW"))
    y = y + b.reshape(1, -1, 1, 1)
    return jnp.maximum(y, 0.0)


def _rdb_ref(x, params):
    (w1, b1), (w2, b2), (w3, b3), (w4, b4), (w5, b5) = params
    c1 = _conv3x3_ref(x, w1, b1)
    c2 = _conv3x3_ref(c1, w2, b2)
    m1 = jnp.concatenate([c2, c1], axis=1)
    c3 = _conv3x3_ref(m1, w3, b3)
    m2 = jnp.concatenate([c3, c2, c1], axis=1)
    c4 = _conv3x3_ref(m2, w4, b4)
    m3 = jnp.concatenate([c4, c3, c2, c1], axis=1)
    gate = _conv3x3_ref(m3, w5, b5)
    return x + gate


def _rrdb_ref(x, params):
    out1 = _rdb_ref(x, params)
    out2 = _rdb_ref(out1, params)
    out3 = _rdb_ref(out2, params)
    return jnp.concatenate([out1, out2, out3], axis=1)


# ---------------------------------------------------------------------------
if __name__ == "__main__":
    key = jax.random.PRNGKey(0)
    k_x, k_p = jax.random.split(key)

    N, C, H, W = 2, 4, 16, 16                     # filters = 4
    x = jax.random.normal(k_x, (N, C, H, W), jnp.float32)
    params = init_rdb_params(k_p, filters=C)

    ref = _rrdb_ref(x, params)

    # 1) Exactness check: f32 matmul operands must match the XLA reference tightly.
    out_f32 = jax.block_until_ready(
        jax.jit(functools.partial(rrdb_pallas, compute_dtype=jnp.float32))(x, params))
    assert out_f32.shape == (N, 3 * C, H, W), out_f32.shape
    err_f32 = float(jnp.max(jnp.abs(out_f32 - ref)))
    assert err_f32 < 5e-4, f"f32 path max err {err_f32}"

    # 2) Performance path: bf16 MXU operands, f32 accumulation (looser tolerance,
    #    15 cascaded convs with bf16-rounded operands).
    out_bf16 = jax.block_until_ready(
        jax.jit(functools.partial(rrdb_pallas, compute_dtype=jnp.bfloat16))(x, params))
    assert out_bf16.shape == (N, 3 * C, H, W), out_bf16.shape
    err_bf16 = float(jnp.max(jnp.abs(out_bf16 - ref)))
    assert err_bf16 < 5e-2, f"bf16 path max err {err_bf16}"

    print("KERNEL_OK")
</pallas_src>

<mosaic_0001>
module attributes {stable_mosaic.version = 11 : i64} {
  func.func @_rrdb_kernel(%arg0: i32, %arg1: i32, %arg2: memref<8x256xf32, #tpu.memory_space<vmem>>, %arg3: memref<8x72xf32, #tpu.memory_space<vmem>>, %arg4: memref<8x72xf32, #tpu.memory_space<vmem>>, %arg5: memref<8x144xf32, #tpu.memory_space<vmem>>, %arg6: memref<8x216xf32, #tpu.memory_space<vmem>>, %arg7: memref<8x288xf32, #tpu.memory_space<vmem>>, %arg8: memref<5x8x1xf32, #tpu.memory_space<vmem>>, %arg9: memref<9x1x256xf32, #tpu.memory_space<vmem>>, %arg10: memref<1x8x256xf32, #tpu.memory_space<vmem>>, %arg11: memref<360x256xf32, #tpu.memory_space<vmem>>, %arg12: memref<8x256xf32, #tpu.memory_space<vmem>>) attributes {dimension_semantics = [#tpu.dimension_semantics<parallel>, #tpu.dimension_semantics<arbitrary>], iteration_bounds = array<i64: 2, 3>, scalar_prefetch = 0 : i64, scratch_operands = 2 : i64, tpu.core_type = #tpu.core_type<tc>, window_params = [{transform_indices = @transform_0, window_bounds = array<i64: 8, 256>}, {pipeline_mode = #tpu.pipeline_mode<synchronous>, transform_indices = @transform_1, window_bounds = array<i64: 8, 72>}, {pipeline_mode = #tpu.pipeline_mode<synchronous>, transform_indices = @transform_2, window_bounds = array<i64: 8, 72>}, {pipeline_mode = #tpu.pipeline_mode<synchronous>, transform_indices = @transform_3, window_bounds = array<i64: 8, 144>}, {pipeline_mode = #tpu.pipeline_mode<synchronous>, transform_indices = @transform_4, window_bounds = array<i64: 8, 216>}, {pipeline_mode = #tpu.pipeline_mode<synchronous>, transform_indices = @transform_5, window_bounds = array<i64: 8, 288>}, {pipeline_mode = #tpu.pipeline_mode<synchronous>, transform_indices = @transform_6, window_bounds = array<i64: 5, 8, 1>}, {pipeline_mode = #tpu.pipeline_mode<synchronous>, transform_indices = @transform_7, window_bounds = array<i64: 9, 1, 256>}, {transform_indices = @transform_8, window_bounds = array<i64: 1, 8, 256>}]} {
    %c0_i32 = arith.constant 0 : i32
    %0 = arith.cmpi eq, %arg1, %c0_i32 : i32
    %1 = arith.extui %0 : i1 to i32
    %c0_i32_0 = arith.constant 0 : i32
    %2 = arith.cmpi ne, %1, %c0_i32_0 : i32
    scf.if %2 {
      %c0_242 = arith.constant 0 : index
      %c0_243 = arith.constant 0 : index
      %299 = vector.load %arg2[%c0_242, %c0_243] : memref<8x256xf32, #tpu.memory_space<vmem>>, vector<8x256xf32>
      %c0_244 = arith.constant 0 : index
      %c0_245 = arith.constant 0 : index
      %300 = vector.load %arg12[%c0_244, %c0_245] : memref<8x256xf32, #tpu.memory_space<vmem>>, vector<8x256xf32>
      tpu.vector_store %arg12[%c0_244, %c0_245], %299 {strides = array<i32>} : memref<8x256xf32, #tpu.memory_space<vmem>>, vector<8x256xf32>,
    } else {
    }
    %c0 = arith.constant 0 : index
    %c0_1 = arith.constant 0 : index
    %3 = vector.load %arg12[%c0, %c0_1] : memref<8x256xf32, #tpu.memory_space<vmem>>, vector<8x256xf32>
    %c17_i32 = arith.constant 17 : i32
    %4 = tpu.dynamic_rotate %3 by %c17_i32 dim 1 : vector<8x256xf32>, i32 -> vector<8x256xf32>
    %c0_2 = arith.constant 0 : index
    %c0_3 = arith.constant 0 : index
    %c0_4 = arith.constant 0 : index
    %5 = vector.load %arg9[%c0_2, %c0_3, %c0_4] : memref<9x1x256xf32, #tpu.memory_space<vmem>>, vector<1x1x256xf32>
    %6 = vector.shape_cast %5 : vector<1x1x256xf32> to vector<1x256xf32>
    %7 = vector.broadcast %6 : vector<1x256xf32> to vector<8x256xf32>
    %8 = arith.mulf %4, %7 : vector<8x256xf32>
    %c288 = arith.constant 288 : index
    %c0_5 = arith.constant 0 : index
    %9 = vector.load %arg11[%c288, %c0_5] : memref<360x256xf32, #tpu.memory_space<vmem>>, vector<8x256xf32>
    tpu.vector_store %arg11[%c288, %c0_5], %8 {strides = array<i32>} : memref<360x256xf32, #tpu.memory_space<vmem>>, vector<8x256xf32>,
    %c16_i32 = arith.constant 16 : i32
    %10 = tpu.dynamic_rotate %3 by %c16_i32 dim 1 : vector<8x256xf32>, i32 -> vector<8x256xf32>
    %c1 = arith.constant 1 : index
    %c0_6 = arith.constant 0 : index
    %c0_7 = arith.constant 0 : index
    %11 = vector.load %arg9[%c1, %c0_6, %c0_7] : memref<9x1x256xf32, #tpu.memory_space<vmem>>, vector<1x1x256xf32>
    %12 = vector.shape_cast %11 : vector<1x1x256xf32> to vector<1x256xf32>
    %13 = vector.broadcast %12 : vector<1x256xf32> to vector<8x256xf32>
    %14 = arith.mulf %10, %13 : vector<8x256xf32>
    %c296 = arith.constant 296 : index
    %c0_8 = arith.constant 0 : index
    %15 = vector.load %arg11[%c296, %c0_8] : memref<360x256xf32, #tpu.memory_space<vmem>>, vector<8x256xf32>
    tpu.vector_store %arg11[%c296, %c0_8], %14 {strides = array<i32>} : memref<360x256xf32, #tpu.memory_space<vmem>>, vector<8x256xf32>,
    %c15_i32 = arith.constant 15 : i32
    %16 = tpu.dynamic_rotate %3 by %c15_i32 dim 1 : vector<8x256xf32>, i32 -> vector<8x256xf32>
    %c2 = arith.constant 2 : index
    %c0_9 = arith.constant 0 : index
    %c0_10 = arith.constant 0 : index
    %17 = vector.load %arg9[%c2, %c0_9, %c0_10] : memref<9x1x256xf32, #tpu.memory_space<vmem>>, vector<1x1x256xf32>
    %18 = vector.shape_cast %17 : vector<1x1x256xf32> to vector<1x256xf32>
    %19 = vector.broadcast %18 : vector<1x256xf32> to vector<8x256xf32>
    %20 = arith.mulf %16, %19 : vector<8x256xf32>
    %c304 = arith.constant 304 : index
    %c0_11 = arith.constant 0 : index
    %21 = vector.load %arg11[%c304, %c0_11] : memref<360x256xf32, #tpu.memory_space<vmem>>, vector<8x256xf32>
    tpu.vector_store %arg11[%c304, %c0_11], %20 {strides = array<i32>} : memref<360x256xf32, #tpu.memory_space<vmem>>, vector<8x256xf32>,
    %c1_i32 = arith.constant 1 : i32
    %22 = tpu.dynamic_rotate %3 by %c1_i32 dim 1 : vector<8x256xf32>, i32 -> vector<8x256xf32>
    %c3 = arith.constant 3 : index
    %c0_12 = arith.constant 0 : index
    %c0_13 = arith.constant 0 : index
    %23 = vector.load %arg9[%c3, %c0_12, %c0_13] : memref<9x1x256xf32, #tpu.memory_space<vmem>>, vector<1x1x256xf32>
    %24 = vector.shape_cast %23 : vector<1x1x256xf32> to vector<1x256xf32>
    %25 = vector.broadcast %24 : vector<1x256xf32> to vector<8x256xf32>
    %26 = arith.mulf %22, %25 : vector<8x256xf32>
    %c312 = arith.constant 312 : index
    %c0_14 = arith.constant 0 : index
    %27 = vector.load %arg11[%c312, %c0_14] : memref<360x256xf32, #tpu.memory_space<vmem>>, vector<8x256xf32>
    tpu.vector_store %arg11[%c312, %c0_14], %26 {strides = array<i32>} : memref<360x256xf32, #tpu.memory_space<vmem>>, vector<8x256xf32>,
    %c320 = arith.constant 320 : index
    %c0_15 = arith.constant 0 : index
    %28 = vector.load %arg11[%c320, %c0_15] : memref<360x256xf32, #tpu.memory_space<vmem>>, vector<8x256xf32>
    tpu.vector_store %arg11[%c320, %c0_15], %3 {strides = array<i32>} : memref<360x256xf32, #tpu.memory_space<vmem>>, vector<8x256xf32>,
    %c255_i32 = arith.constant 255 : i32
    %29 = tpu.dynamic_rotate %3 by %c255_i32 dim 1 : vector<8x256xf32>, i32 -> vector<8x256xf32>
    %c5 = arith.constant 5 : index
    %c0_16 = arith.constant 0 : index
    %c0_17 = arith.constant 0 : index
    %30 = vector.load %arg9[%c5, %c0_16, %c0_17] : memref<9x1x256xf32, #tpu.memory_space<vmem>>, vector<1x1x256xf32>
    %31 = vector.shape_cast %30 : vector<1x1x256xf32> to vector<1x256xf32>
    %32 = vector.broadcast %31 : vector<1x256xf32> to vector<8x256xf32>
    %33 = arith.mulf %29, %32 : vector<8x256xf32>
    %c328 = arith.constant 328 : index
    %c0_18 = arith.constant 0 : index
    %34 = vector.load %arg11[%c328, %c0_18] : memref<360x256xf32, #tpu.memory_space<vmem>>, vector<8x256xf32>
    tpu.vector_store %arg11[%c328, %c0_18], %33 {strides = array<i32>} : memref<360x256xf32, #tpu.memory_space<vmem>>, vector<8x256xf32>,
    %c241_i32 = arith.constant 241 : i32
    %35 = tpu.dynamic_rotate %3 by %c241_i32 dim 1 : vector<8x256xf32>, i32 -> vector<8x256xf32>
    %c6 = arith.constant 6 : index
    %c0_19 = arith.constant 0 : index
    %c0_20 = arith.constant 0 : index
    %36 = vector.load %arg9[%c6, %c0_19, %c0_20] : memref<9x1x256xf32, #tpu.memory_space<vmem>>, vector<1x1x256xf32>
    %37 = vector.shape_cast %36 : vector<1x1x256xf32> to vector<1x256xf32>
    %38 = vector.broadcast %37 : vector<1x256xf32> to vector<8x256xf32>
    %39 = arith.mulf %35, %38 : vector<8x256xf32>
    %c336 = arith.constant 336 : index
    %c0_21 = arith.constant 0 : index
    %40 = vector.load %arg11[%c336, %c0_21] : memref<360x256xf32, #tpu.memory_space<vmem>>, vector<8x256xf32>
    tpu.vector_store %arg11[%c336, %c0_21], %39 {strides = array<i32>} : memref<360x256xf32, #tpu.memory_space<vmem>>, vector<8x256xf32>,
    %c240_i32 = arith.constant 240 : i32
    %41 = tpu.dynamic_rotate %3 by %c240_i32 dim 1 : vector<8x256xf32>, i32 -> vector<8x256xf32>
    %c7 = arith.constant 7 : index
    %c0_22 = arith.constant 0 : index
    %c0_23 = arith.constant 0 : index
    %42 = vector.load %arg9[%c7, %c0_22, %c0_23] : memref<9x1x256xf32, #tpu.memory_space<vmem>>, vector<1x1x256xf32>
    %43 = vector.shape_cast %42 : vector<1x1x256xf32> to vector<1x256xf32>
    %44 = vector.broadcast %43 : vector<1x256xf32> to vector<8x256xf32>
    %45 = arith.mulf %41, %44 : vector<8x256xf32>
    %c344 = arith.constant 344 : index
    %c0_24 = arith.constant 0 : index
    %46 = vector.load %arg11[%c344, %c0_24] : memref<360x256xf32, #tpu.memory_space<vmem>>, vector<8x256xf32>
    tpu.vector_store %arg11[%c344, %c0_24], %45 {strides = array<i32>} : memref<360x256xf32, #tpu.memory_space<vmem>>, vector<8x256xf32>,
    %c239_i32 = arith.constant 239 : i32
    %47 = tpu.dynamic_rotate %3 by %c239_i32 dim 1 : vector<8x256xf32>, i32 -> vector<8x256xf32>
    %c8 = arith.constant 8 : index
    %c0_25 = arith.constant 0 : index
    %c0_26 = arith.constant 0 : index
    %48 = vector.load %arg9[%c8, %c0_25, %c0_26] : memref<9x1x256xf32, #tpu.memory_space<vmem>>, vector<1x1x256xf32>
    %49 = vector.shape_cast %48 : vector<1x1x256xf32> to vector<1x256xf32>
    %50 = vector.broadcast %49 : vector<1x256xf32> to vector<8x256xf32>
    %51 = arith.mulf %47, %50 : vector<8x256xf32>
    %c352 = arith.constant 352 : index
    %c0_27 = arith.constant 0 : index
    %52 = vector.load %arg11[%c352, %c0_27] : memref<360x256xf32, #tpu.memory_space<vmem>>, vector<8x256xf32>
    tpu.vector_store %arg11[%c352, %c0_27], %51 {strides = array<i32>} : memref<360x256xf32, #tpu.memory_space<vmem>>, vector<8x256xf32>,
    %c0_28 = arith.constant 0 : index
    %c0_29 = arith.constant 0 : index
    %53 = vector.load %arg3[%c0_28, %c0_29] : memref<8x72xf32, #tpu.memory_space<vmem>>, vector<8x72xf32>
    %c288_30 = arith.constant 288 : index
    %c0_31 = arith.constant 0 : index
    %54 = vector.load %arg11[%c288_30, %c0_31] : memref<360x256xf32, #tpu.memory_space<vmem>>, vector<72x256xf32>
    %cst = arith.constant dense<0.000000e+00> : vector<8x256xf32>
    %55 = tpu.matmul %53, %54, %cst {dimension_numbers = #tpu.dot_dimension_numbers<[1], [0], [0], [1], [0, 0, 1, 1], [], []>} : vector<8x72xf32>, vector<72x256xf32>, vector<8x256xf32> -> vector<8x256xf32>
    %c0_32 = arith.constant 0 : index
    %c0_33 = arith.constant 0 : index
    %c0_34 = arith.constant 0 : index
    %56 = vector.load %arg8[%c0_32, %c0_33, %c0_34] : memref<5x8x1xf32, #tpu.memory_space<vmem>>, vector<1x8x1xf32>
    %57 = vector.shape_cast %56 : vector<1x8x1xf32> to vector<8x1xf32>
    %58 = vector.broadcast %57 : vector<8x1xf32> to vector<8x256xf32>
    %59 = arith.addf %55, %58 : vector<8x256xf32>
    %cst_35 = arith.constant 0.000000e+00 : f32
    %60 = vector.broadcast %cst_35 : f32 to vector<8x256xf32>
    %61 = arith.maximumf %59, %60 : vector<8x256xf32>
    %c17_i32_36 = arith.constant 17 : i32
    %62 = tpu.dynamic_rotate %61 by %c17_i32_36 dim 1 : vector<8x256xf32>, i32 -> vector<8x256xf32>
    %c0_37 = arith.constant 0 : index
    %c0_38 = arith.constant 0 : index
    %c0_39 = arith.constant 0 : index
    %63 = vector.load %arg9[%c0_37, %c0_38, %c0_39] : memref<9x1x256xf32, #tpu.memory_space<vmem>>, vector<1x1x256xf32>
    %64 = vector.shape_cast %63 : vector<1x1x256xf32> to vector<1x256xf32>
    %65 = vector.broadcast %64 : vector<1x256xf32> to vector<8x256xf32>
    %66 = arith.mulf %62, %65 : vector<8x256xf32>
    %c0_40 = arith.constant 0 : index
    %c0_41 = arith.constant 0 : index
    %67 = vector.load %arg11[%c0_40, %c0_41] : memref<360x256xf32, #tpu.memory_space<vmem>>, vector<8x256xf32>
    tpu.vector_store %arg11[%c0_40, %c0_41], %66 {strides = array<i32>} : memref<360x256xf32, #tpu.memory_space<vmem>>, vector<8x256xf32>,
    %c16_i32_42 = arith.constant 16 : i32
    %68 = tpu.dynamic_rotate %61 by %c16_i32_42 dim 1 : vector<8x256xf32>, i32 -> vector<8x256xf32>
    %c1_43 = arith.constant 1 : index
    %c0_44 = arith.constant 0 : index
    %c0_45 = arith.constant 0 : index
    %69 = vector.load %arg9[%c1_43, %c0_44, %c0_45] : memref<9x1x256xf32, #tpu.memory_space<vmem>>, vector<1x1x256xf32>
    %70 = vector.shape_cast %69 : vector<1x1x256xf32> to vector<1x256xf32>
    %71 = vector.broadcast %70 : vector<1x256xf32> to vector<8x256xf32>
    %72 = arith.mulf %68, %71 : vector<8x256xf32>
    %c8_46 = arith.constant 8 : index
    %c0_47 = arith.constant 0 : index
    %73 = vector.load %arg11[%c8_46, %c0_47] : memref<360x256xf32, #tpu.memory_space<vmem>>, vector<8x256xf32>
    tpu.vector_store %arg11[%c8_46, %c0_47], %72 {strides = array<i32>} : memref<360x256xf32, #tpu.memory_space<vmem>>, vector<8x256xf32>,
    %c15_i32_48 = arith.constant 15 : i32
    %74 = tpu.dynamic_rotate %61 by %c15_i32_48 dim 1 : vector<8x256xf32>, i32 -> vector<8x256xf32>
    %c2_49 = arith.constant 2 : index
    %c0_50 = arith.constant 0 : index
    %c0_51 = arith.constant 0 : index
    %75 = vector.load %arg9[%c2_49, %c0_50, %c0_51] : memref<9x1x256xf32, #tpu.memory_space<vmem>>, vector<1x1x256xf32>
    %76 = vector.shape_cast %75 : vector<1x1x256xf32> to vector<1x256xf32>
    %77 = vector.broadcast %76 : vector<1x256xf32> to vector<8x256xf32>
    %78 = arith.mulf %74, %77 : vector<8x256xf32>
    %c16 = arith.constant 16 : index
    %c0_52 = arith.constant 0 : index
    %79 = vector.load %arg11[%c16, %c0_52] : memref<360x256xf32, #tpu.memory_space<vmem>>, vector<8x256xf32>
    tpu.vector_store %arg11[%c16, %c0_52], %78 {strides = array<i32>} : memref<360x256xf32, #tpu.memory_space<vmem>>, vector<8x256xf32>,
    %c1_i32_53 = arith.constant 1 : i32
    %80 = tpu.dynamic_rotate %61 by %c1_i32_53 dim 1 : vector<8x256xf32>, i32 -> vector<8x256xf32>
    %c3_54 = arith.constant 3 : index
    %c0_55 = arith.constant 0 : index
    %c0_56 = arith.constant 0 : index
    %81 = vector.load %arg9[%c3_54, %c0_55, %c0_56] : memref<9x1x256xf32, #tpu.memory_space<vmem>>, vector<1x1x256xf32>
    %82 = vector.shape_cast %81 : vector<1x1x256xf32> to vector<1x256xf32>
    %83 = vector.broadcast %82 : vector<1x256xf32> to vector<8x256xf32>
    %84 = arith.mulf %80, %83 : vector<8x256xf32>
    %c24 = arith.constant 24 : index
    %c0_57 = arith.constant 0 : index
    %85 = vector.load %arg11[%c24, %c0_57] : memref<360x256xf32, #tpu.memory_space<vmem>>, vector<8x256xf32>
    tpu.vector_store %arg11[%c24, %c0_57], %84 {strides = array<i32>} : memref<360x256xf32, #tpu.memory_space<vmem>>, vector<8x256xf32>,
    %c32 = arith.constant 32 : index
    %c0_58 = arith.constant 0 : index
    %86 = vector.load %arg11[%c32, %c0_58] : memref<360x256xf32, #tpu.memory_space<vmem>>, vector<8x256xf32>
    tpu.vector_store %arg11[%c32, %c0_58], %61 {strides = array<i32>} : memref<360x256xf32, #tpu.memory_space<vmem>>, vector<8x256xf32>,
    %c255_i32_59 = arith.constant 255 : i32
    %87 = tpu.dynamic_rotate %61 by %c255_i32_59 dim 1 : vector<8x256xf32>, i32 -> vector<8x256xf32>
    %c5_60 = arith.constant 5 : index
    %c0_61 = arith.constant 0 : index
    %c0_62 = arith.constant 0 : index
    %88 = vector.load %arg9[%c5_60, %c0_61, %c0_62] : memref<9x1x256xf32, #tpu.memory_space<vmem>>, vector<1x1x256xf32>
    %89 = vector.shape_cast %88 : vector<1x1x256xf32> to vector<1x256xf32>
    %90 = vector.broadcast %89 : vector<1x256xf32> to vector<8x256xf32>
    %91 = arith.mulf %87, %90 : vector<8x256xf32>
    %c40 = arith.constant 40 : index
    %c0_63 = arith.constant 0 : index
    %92 = vector.load %arg11[%c40, %c0_63] : memref<360x256xf32, #tpu.memory_space<vmem>>, vector<8x256xf32>
    tpu.vector_store %arg11[%c40, %c0_63], %91 {strides = array<i32>} : memref<360x256xf32, #tpu.memory_space<vmem>>, vector<8x256xf32>,
    %c241_i32_64 = arith.constant 241 : i32
    %93 = tpu.dynamic_rotate %61 by %c241_i32_64 dim 1 : vector<8x256xf32>, i32 -> vector<8x256xf32>
    %c6_65 = arith.constant 6 : index
    %c0_66 = arith.constant 0 : index
    %c0_67 = arith.constant 0 : index
    %94 = vector.load %arg9[%c6_65, %c0_66, %c0_67] : memref<9x1x256xf32, #tpu.memory_space<vmem>>, vector<1x1x256xf32>
    %95 = vector.shape_cast %94 : vector<1x1x256xf32> to vector<1x256xf32>
    %96 = vector.broadcast %95 : vector<1x256xf32> to vector<8x256xf32>
    %97 = arith.mulf %93, %96 : vector<8x256xf32>
    %c48 = arith.constant 48 : index
    %c0_68 = arith.constant 0 : index
    %98 = vector.load %arg11[%c48, %c0_68] : memref<360x256xf32, #tpu.memory_space<vmem>>, vector<8x256xf32>
    tpu.vector_store %arg11[%c48, %c0_68], %97 {strides = array<i32>} : memref<360x256xf32, #tpu.memory_space<vmem>>, vector<8x256xf32>,
    %c240_i32_69 = arith.constant 240 : i32
    %99 = tpu.dynamic_rotate %61 by %c240_i32_69 dim 1 : vector<8x256xf32>, i32 -> vector<8x256xf32>
    %c7_70 = arith.constant 7 : index
    %c0_71 = arith.constant 0 : index
    %c0_72 = arith.constant 0 : index
    %100 = vector.load %arg9[%c7_70, %c0_71, %c0_72] : memref<9x1x256xf32, #tpu.memory_space<vmem>>, vector<1x1x256xf32>
    %101 = vector.shape_cast %100 : vector<1x1x256xf32> to vector<1x256xf32>
    %102 = vector.broadcast %101 : vector<1x256xf32> to vector<8x256xf32>
    %103 = arith.mulf %99, %102 : vector<8x256xf32>
    %c56 = arith.constant 56 : index
    %c0_73 = arith.constant 0 : index
    %104 = vector.load %arg11[%c56, %c0_73] : memref<360x256xf32, #tpu.memory_space<vmem>>, vector<8x256xf32>
    tpu.vector_store %arg11[%c56, %c0_73], %103 {strides = array<i32>} : memref<360x256xf32, #tpu.memory_space<vmem>>, vector<8x256xf32>,
    %c239_i32_74 = arith.constant 239 : i32
    %105 = tpu.dynamic_rotate %61 by %c239_i32_74 dim 1 : vector<8x256xf32>, i32 -> vector<8x256xf32>
    %c8_75 = arith.constant 8 : index
    %c0_76 = arith.constant 0 : index
    %c0_77 = arith.constant 0 : index
    %106 = vector.load %arg9[%c8_75, %c0_76, %c0_77] : memref<9x1x256xf32, #tpu.memory_space<vmem>>, vector<1x1x256xf32>
    %107 = vector.shape_cast %106 : vector<1x1x256xf32> to vector<1x256xf32>
    %108 = vector.broadcast %107 : vector<1x256xf32> to vector<8x256xf32>
    %109 = arith.mulf %105, %108 : vector<8x256xf32>
    %c64 = arith.constant 64 : index
    %c0_78 = arith.constant 0 : index
    %110 = vector.load %arg11[%c64, %c0_78] : memref<360x256xf32, #tpu.memory_space<vmem>>, vector<8x256xf32>
    tpu.vector_store %arg11[%c64, %c0_78], %109 {strides = array<i32>} : memref<360x256xf32, #tpu.memory_space<vmem>>, vector<8x256xf32>,
    %c0_79 = arith.constant 0 : index
    %c0_80 = arith.constant 0 : index
    %111 = vector.load %arg4[%c0_79, %c0_80] : memref<8x72xf32, #tpu.memory_space<vmem>>, vector<8x72xf32>
    %c0_81 = arith.constant 0 : index
    %c0_82 = arith.constant 0 : index
    %112 = vector.load %arg11[%c0_81, %c0_82] : memref<360x256xf32, #tpu.memory_space<vmem>>, vector<72x256xf32>
    %cst_83 = arith.constant dense<0.000000e+00> : vector<8x256xf32>
    %113 = tpu.matmul %111, %112, %cst_83 {dimension_numbers = #tpu.dot_dimension_numbers<[1], [0], [0], [1], [0, 0, 1, 1], [], []>} : vector<8x72xf32>, vector<72x256xf32>, vector<8x256xf32> -> vector<8x256xf32>
    %c1_84 = arith.constant 1 : index
    %c0_85 = arith.constant 0 : index
    %c0_86 = arith.constant 0 : index
    %114 = vector.load %arg8[%c1_84, %c0_85, %c0_86] : memref<5x8x1xf32, #tpu.memory_space<vmem>>, vector<1x8x1xf32>
    %115 = vector.shape_cast %114 : vector<1x8x1xf32> to vector<8x1xf32>
    %116 = vector.broadcast %115 : vector<8x1xf32> to vector<8x256xf32>
    %117 = arith.addf %113, %116 : vector<8x256xf32>
    %cst_87 = arith.constant 0.000000e+00 : f32
    %118 = vector.broadcast %cst_87 : f32 to vector<8x256xf32>
    %119 = arith.maximumf %117, %118 : vector<8x256xf32>
    %c17_i32_88 = arith.constant 17 : i32
    %120 = tpu.dynamic_rotate %119 by %c17_i32_88 dim 1 : vector<8x256xf32>, i32 -> vector<8x256xf32>
    %c0_89 = arith.constant 0 : index
    %c0_90 = arith.constant 0 : index
    %c0_91 = arith.constant 0 : index
    %121 = vector.load %arg9[%c0_89, %c0_90, %c0_91] : memref<9x1x256xf32, #tpu.memory_space<vmem>>, vector<1x1x256xf32>
    %122 = vector.shape_cast %121 : vector<1x1x256xf32> to vector<1x256xf32>
    %123 = vector.broadcast %122 : vector<1x256xf32> to vector<8x256xf32>
    %124 = arith.mulf %120, %123 : vector<8x256xf32>
    %c72 = arith.constant 72 : index
    %c0_92 = arith.constant 0 : index
    %125 = vector.load %arg11[%c72, %c0_92] : memref<360x256xf32, #tpu.memory_space<vmem>>, vector<8x256xf32>
    tpu.vector_store %arg11[%c72, %c0_92], %124 {strides = array<i32>} : memref<360x256xf32, #tpu.memory_space<vmem>>, vector<8x256xf32>,
    %c16_i32_93 = arith.constant 16 : i32
    %126 = tpu.dynamic_rotate %119 by %c16_i32_93 dim 1 : vector<8x256xf32>, i32 -> vector<8x256xf32>
    %c1_94 = arith.constant 1 : index
    %c0_95 = arith.constant 0 : index
    %c0_96 = arith.constant 0 : index
    %127 = vector.load %arg9[%c1_94, %c0_95, %c0_96] : memref<9x1x256xf32, #tpu.memory_space<vmem>>, vector<1x1x256xf32>
    %128 = vector.shape_cast %127 : vector<1x1x256xf32> to vector<1x256xf32>
    %129 = vector.broadcast %128 : vector<1x256xf32> to vector<8x256xf32>
    %130 = arith.mulf %126, %129 : vector<8x256xf32>
    %c80 = arith.constant 80 : index
    %c0_97 = arith.constant 0 : index
    %131 = vector.load %arg11[%c80, %c0_97] : memref<360x256xf32, #tpu.memory_space<vmem>>, vector<8x256xf32>
    tpu.vector_store %arg11[%c80, %c0_97], %130 {strides = array<i32>} : memref<360x256xf32, #tpu.memory_space<vmem>>, vector<8x256xf32>,
    %c15_i32_98 = arith.constant 15 : i32
    %132 = tpu.dynamic_rotate %119 by %c15_i32_98 dim 1 : vector<8x256xf32>, i32 -> vector<8x256xf32>
    %c2_99 = arith.constant 2 : index
    %c0_100 = arith.constant 0 : index
    %c0_101 = arith.constant 0 : index
    %133 = vector.load %arg9[%c2_99, %c0_100, %c0_101] : memref<9x1x256xf32, #tpu.memory_space<vmem>>, vector<1x1x256xf32>
    %134 = vector.shape_cast %133 : vector<1x1x256xf32> to vector<1x256xf32>
    %135 = vector.broadcast %134 : vector<1x256xf32> to vector<8x256xf32>
    %136 = arith.mulf %132, %135 : vector<8x256xf32>
    %c88 = arith.constant 88 : index
    %c0_102 = arith.constant 0 : index
    %137 = vector.load %arg11[%c88, %c0_102] : memref<360x256xf32, #tpu.memory_space<vmem>>, vector<8x256xf32>
    tpu.vector_store %arg11[%c88, %c0_102], %136 {strides = array<i32>} : memref<360x256xf32, #tpu.memory_space<vmem>>, vector<8x256xf32>,
    %c1_i32_103 = arith.constant 1 : i32
    %138 = tpu.dynamic_rotate %119 by %c1_i32_103 dim 1 : vector<8x256xf32>, i32 -> vector<8x256xf32>
    %c3_104 = arith.constant 3 : index
    %c0_105 = arith.constant 0 : index
    %c0_106 = arith.constant 0 : index
    %139 = vector.load %arg9[%c3_104, %c0_105, %c0_106] : memref<9x1x256xf32, #tpu.memory_space<vmem>>, vector<1x1x256xf32>
    %140 = vector.shape_cast %139 : vector<1x1x256xf32> to vector<1x256xf32>
    %141 = vector.broadcast %140 : vector<1x256xf32> to vector<8x256xf32>
    %142 = arith.mulf %138, %141 : vector<8x256xf32>
    %c96 = arith.constant 96 : index
    %c0_107 = arith.constant 0 : index
    %143 = vector.load %arg11[%c96, %c0_107] : memref<360x256xf32, #tpu.memory_space<vmem>>, vector<8x256xf32>
    tpu.vector_store %arg11[%c96, %c0_107], %142 {strides = array<i32>} : memref<360x256xf32, #tpu.memory_space<vmem>>, vector<8x256xf32>,
    %c104 = arith.constant 104 : index
    %c0_108 = arith.constant 0 : index
    %144 = vector.load %arg11[%c104, %c0_108] : memref<360x256xf32, #tpu.memory_space<vmem>>, vector<8x256xf32>
    tpu.vector_store %arg11[%c104, %c0_108], %119 {strides = array<i32>} : memref<360x256xf32, #tpu.memory_space<vmem>>, vector<8x256xf32>,
    %c255_i32_109 = arith.constant 255 : i32
    %145 = tpu.dynamic_rotate %119 by %c255_i32_109 dim 1 : vector<8x256xf32>, i32 -> vector<8x256xf32>
    %c5_110 = arith.constant 5 : index
    %c0_111 = arith.constant 0 : index
    %c0_112 = arith.constant 0 : index
    %146 = vector.load %arg9[%c5_110, %c0_111, %c0_112] : memref<9x1x256xf32, #tpu.memory_space<vmem>>, vector<1x1x256xf32>
    %147 = vector.shape_cast %146 : vector<1x1x256xf32> to vector<1x256xf32>
    %148 = vector.broadcast %147 : vector<1x256xf32> to vector<8x256xf32>
    %149 = arith.mulf %145, %148 : vector<8x256xf32>
    %c112 = arith.constant 112 : index
    %c0_113 = arith.constant 0 : index
    %150 = vector.load %arg11[%c112, %c0_113] : memref<360x256xf32, #tpu.memory_space<vmem>>, vector<8x256xf32>
    tpu.vector_store %arg11[%c112, %c0_113], %149 {strides = array<i32>} : memref<360x256xf32, #tpu.memory_space<vmem>>, vector<8x256xf32>,
    %c241_i32_114 = arith.constant 241 : i32
    %151 = tpu.dynamic_rotate %119 by %c241_i32_114 dim 1 : vector<8x256xf32>, i32 -> vector<8x256xf32>
    %c6_115 = arith.constant 6 : index
    %c0_116 = arith.constant 0 : index
    %c0_117 = arith.constant 0 : index
    %152 = vector.load %arg9[%c6_115, %c0_116, %c0_117] : memref<9x1x256xf32, #tpu.memory_space<vmem>>, vector<1x1x256xf32>
    %153 = vector.shape_cast %152 : vector<1x1x256xf32> to vector<1x256xf32>
    %154 = vector.broadcast %153 : vector<1x256xf32> to vector<8x256xf32>
    %155 = arith.mulf %151, %154 : vector<8x256xf32>
    %c120 = arith.constant 120 : index
    %c0_118 = arith.constant 0 : index
    %156 = vector.load %arg11[%c120, %c0_118] : memref<360x256xf32, #tpu.memory_space<vmem>>, vector<8x256xf32>
    tpu.vector_store %arg11[%c120, %c0_118], %155 {strides = array<i32>} : memref<360x256xf32, #tpu.memory_space<vmem>>, vector<8x256xf32>,
    %c240_i32_119 = arith.constant 240 : i32
    %157 = tpu.dynamic_rotate %119 by %c240_i32_119 dim 1 : vector<8x256xf32>, i32 -> vector<8x256xf32>
    %c7_120 = arith.constant 7 : index
    %c0_121 = arith.constant 0 : index
    %c0_122 = arith.constant 0 : index
    %158 = vector.load %arg9[%c7_120, %c0_121, %c0_122] : memref<9x1x256xf32, #tpu.memory_space<vmem>>, vector<1x1x256xf32>
    %159 = vector.shape_cast %158 : vector<1x1x256xf32> to vector<1x256xf32>
    %160 = vector.broadcast %159 : vector<1x256xf32> to vector<8x256xf32>
    %161 = arith.mulf %157, %160 : vector<8x256xf32>
    %c128 = arith.constant 128 : index
    %c0_123 = arith.constant 0 : index
    %162 = vector.load %arg11[%c128, %c0_123] : memref<360x256xf32, #tpu.memory_space<vmem>>, vector<8x256xf32>
    tpu.vector_store %arg11[%c128, %c0_123], %161 {strides = array<i32>} : memref<360x256xf32, #tpu.memory_space<vmem>>, vector<8x256xf32>,
    %c239_i32_124 = arith.constant 239 : i32
    %163 = tpu.dynamic_rotate %119 by %c239_i32_124 dim 1 : vector<8x256xf32>, i32 -> vector<8x256xf32>
    %c8_125 = arith.constant 8 : index
    %c0_126 = arith.constant 0 : index
    %c0_127 = arith.constant 0 : index
    %164 = vector.load %arg9[%c8_125, %c0_126, %c0_127] : memref<9x1x256xf32, #tpu.memory_space<vmem>>, vector<1x1x256xf32>
    %165 = vector.shape_cast %164 : vector<1x1x256xf32> to vector<1x256xf32>
    %166 = vector.broadcast %165 : vector<1x256xf32> to vector<8x256xf32>
    %167 = arith.mulf %163, %166 : vector<8x256xf32>
    %c136 = arith.constant 136 : index
    %c0_128 = arith.constant 0 : index
    %168 = vector.load %arg11[%c136, %c0_128] : memref<360x256xf32, #tpu.memory_space<vmem>>, vector<8x256xf32>
    tpu.vector_store %arg11[%c136, %c0_128], %167 {strides = array<i32>} : memref<360x256xf32, #tpu.memory_space<vmem>>, vector<8x256xf32>,
    %c0_129 = arith.constant 0 : index
    %c0_130 = arith.constant 0 : index
    %169 = vector.load %arg5[%c0_129, %c0_130] : memref<8x144xf32, #tpu.memory_space<vmem>>, vector<8x144xf32>
    %c0_131 = arith.constant 0 : index
    %c0_132 = arith.constant 0 : index
    %170 = vector.load %arg11[%c0_131, %c0_132] : memref<360x256xf32, #tpu.memory_space<vmem>>, vector<144x256xf32>
    %cst_133 = arith.constant dense<0.000000e+00> : vector<8x256xf32>
    %171 = tpu.matmul %169, %170, %cst_133 {dimension_numbers = #tpu.dot_dimension_numbers<[1], [0], [0], [1], [0, 0, 1, 1], [], []>} : vector<8x144xf32>, vector<144x256xf32>, vector<8x256xf32> -> vector<8x256xf32>
    %c2_134 = arith.constant 2 : index
    %c0_135 = arith.constant 0 : index
    %c0_136 = arith.constant 0 : index
    %172 = vector.load %arg8[%c2_134, %c0_135, %c0_136] : memref<5x8x1xf32, #tpu.memory_space<vmem>>, vector<1x8x1xf32>
    %173 = vector.shape_cast %172 : vector<1x8x1xf32> to vector<8x1xf32>
    %174 = vector.broadcast %173 : vector<8x1xf32> to vector<8x256xf32>
    %175 = arith.addf %171, %174 : vector<8x256xf32>
    %cst_137 = arith.constant 0.000000e+00 : f32
    %176 = vector.broadcast %cst_137 : f32 to vector<8x256xf32>
    %177 = arith.maximumf %175, %176 : vector<8x256xf32>
    %c17_i32_138 = arith.constant 17 : i32
    %178 = tpu.dynamic_rotate %177 by %c17_i32_138 dim 1 : vector<8x256xf32>, i32 -> vector<8x256xf32>
    %c0_139 = arith.constant 0 : index
    %c0_140 = arith.constant 0 : index
    %c0_141 = arith.constant 0 : index
    %179 = vector.load %arg9[%c0_139, %c0_140, %c0_141] : memref<9x1x256xf32, #tpu.memory_space<vmem>>, vector<1x1x256xf32>
    %180 = vector.shape_cast %179 : vector<1x1x256xf32> to vector<1x256xf32>
    %181 = vector.broadcast %180 : vector<1x256xf32> to vector<8x256xf32>
    %182 = arith.mulf %178, %181 : vector<8x256xf32>
    %c144 = arith.constant 144 : index
    %c0_142 = arith.constant 0 : index
    %183 = vector.load %arg11[%c144, %c0_142] : memref<360x256xf32, #tpu.memory_space<vmem>>, vector<8x256xf32>
    tpu.vector_store %arg11[%c144, %c0_142], %182 {strides = array<i32>} : memref<360x256xf32, #tpu.memory_space<vmem>>, vector<8x256xf32>,
    %c16_i32_143 = arith.constant 16 : i32
    %184 = tpu.dynamic_rotate %177 by %c16_i32_143 dim 1 : vector<8x256xf32>, i32 -> vector<8x256xf32>
    %c1_144 = arith.constant 1 : index
    %c0_145 = arith.constant 0 : index
    %c0_146 = arith.constant 0 : index
    %185 = vector.load %arg9[%c1_144, %c0_145, %c0_146] : memref<9x1x256xf32, #tpu.memory_space<vmem>>, vector<1x1x256xf32>
    %186 = vector.shape_cast %185 : vector<1x1x256xf32> to vector<1x256xf32>
    %187 = vector.broadcast %186 : vector<1x256xf32> to vector<8x256xf32>
    %188 = arith.mulf %184, %187 : vector<8x256xf32>
    %c152 = arith.constant 152 : index
    %c0_147 = arith.constant 0 : index
    %189 = vector.load %arg11[%c152, %c0_147] : memref<360x256xf32, #tpu.memory_space<vmem>>, vector<8x256xf32>
    tpu.vector_store %arg11[%c152, %c0_147], %188 {strides = array<i32>} : memref<360x256xf32, #tpu.memory_space<vmem>>, vector<8x256xf32>,
    %c15_i32_148 = arith.constant 15 : i32
    %190 = tpu.dynamic_rotate %177 by %c15_i32_148 dim 1 : vector<8x256xf32>, i32 -> vector<8x256xf32>
    %c2_149 = arith.constant 2 : index
    %c0_150 = arith.constant 0 : index
    %c0_151 = arith.constant 0 : index
    %191 = vector.load %arg9[%c2_149, %c0_150, %c0_151] : memref<9x1x256xf32, #tpu.memory_space<vmem>>, vector<1x1x256xf32>
    %192 = vector.shape_cast %191 : vector<1x1x256xf32> to vector<1x256xf32>
    %193 = vector.broadcast %192 : vector<1x256xf32> to vector<8x256xf32>
    %194 = arith.mulf %190, %193 : vector<8x256xf32>
    %c160 = arith.constant 160 : index
    %c0_152 = arith.constant 0 : index
    %195 = vector.load %arg11[%c160, %c0_152] : memref<360x256xf32, #tpu.memory_space<vmem>>, vector<8x256xf32>
    tpu.vector_store %arg11[%c160, %c0_152], %194 {strides = array<i32>} : memref<360x256xf32, #tpu.memory_space<vmem>>, vector<8x256xf32>,
    %c1_i32_153 = arith.constant 1 : i32
    %196 = tpu.dynamic_rotate %177 by %c1_i32_153 dim 1 : vector<8x256xf32>, i32 -> vector<8x256xf32>
    %c3_154 = arith.constant 3 : index
    %c0_155 = arith.constant 0 : index
    %c0_156 = arith.constant 0 : index
    %197 = vector.load %arg9[%c3_154, %c0_155, %c0_156] : memref<9x1x256xf32, #tpu.memory_space<vmem>>, vector<1x1x256xf32>
    %198 = vector.shape_cast %197 : vector<1x1x256xf32> to vector<1x256xf32>
    %199 = vector.broadcast %198 : vector<1x256xf32> to vector<8x256xf32>
    %200 = arith.mulf %196, %199 : vector<8x256xf32>
    %c168 = arith.constant 168 : index
    %c0_157 = arith.constant 0 : index
    %201 = vector.load %arg11[%c168, %c0_157] : memref<360x256xf32, #tpu.memory_space<vmem>>, vector<8x256xf32>
    tpu.vector_store %arg11[%c168, %c0_157], %200 {strides = array<i32>} : memref<360x256xf32, #tpu.memory_space<vmem>>, vector<8x256xf32>,
    %c176 = arith.constant 176 : index
    %c0_158 = arith.constant 0 : index
    %202 = vector.load %arg11[%c176, %c0_158] : memref<360x256xf32, #tpu.memory_space<vmem>>, vector<8x256xf32>
    tpu.vector_store %arg11[%c176, %c0_158], %177 {strides = array<i32>} : memref<360x256xf32, #tpu.memory_space<vmem>>, vector<8x256xf32>,
    %c255_i32_159 = arith.constant 255 : i32
    %203 = tpu.dynamic_rotate %177 by %c255_i32_159 dim 1 : vector<8x256xf32>, i32 -> vector<8x256xf32>
    %c5_160 = arith.constant 5 : index
    %c0_161 = arith.constant 0 : index
    %c0_162 = arith.constant 0 : index
    %204 = vector.load %arg9[%c5_160, %c0_161, %c0_162] : memref<9x1x256xf32, #tpu.memory_space<vmem>>, vector<1x1x256xf32>
    %205 = vector.shape_cast %204 : vector<1x1x256xf32> to vector<1x256xf32>
    %206 = vector.broadcast %205 : vector<1x256xf32> to vector<8x256xf32>
    %207 = arith.mulf %203, %206 : vector<8x256xf32>
    %c184 = arith.constant 184 : index
    %c0_163 = arith.constant 0 : index
    %208 = vector.load %arg11[%c184, %c0_163] : memref<360x256xf32, #tpu.memory_space<vmem>>, vector<8x256xf32>
    tpu.vector_store %arg11[%c184, %c0_163], %207 {strides = array<i32>} : memref<360x256xf32, #tpu.memory_space<vmem>>, vector<8x256xf32>,
    %c241_i32_164 = arith.constant 241 : i32
    %209 = tpu.dynamic_rotate %177 by %c241_i32_164 dim 1 : vector<8x256xf32>, i32 -> vector<8x256xf32>
    %c6_165 = arith.constant 6 : index
    %c0_166 = arith.constant 0 : index
    %c0_167 = arith.constant 0 : index
    %210 = vector.load %arg9[%c6_165, %c0_166, %c0_167] : memref<9x1x256xf32, #tpu.memory_space<vmem>>, vector<1x1x256xf32>
    %211 = vector.shape_cast %210 : vector<1x1x256xf32> to vector<1x256xf32>
    %212 = vector.broadcast %211 : vector<1x256xf32> to vector<8x256xf32>
    %213 = arith.mulf %209, %212 : vector<8x256xf32>
    %c192 = arith.constant 192 : index
    %c0_168 = arith.constant 0 : index
    %214 = vector.load %arg11[%c192, %c0_168] : memref<360x256xf32, #tpu.memory_space<vmem>>, vector<8x256xf32>
    tpu.vector_store %arg11[%c192, %c0_168], %213 {strides = array<i32>} : memref<360x256xf32, #tpu.memory_space<vmem>>, vector<8x256xf32>,
    %c240_i32_169 = arith.constant 240 : i32
    %215 = tpu.dynamic_rotate %177 by %c240_i32_169 dim 1 : vector<8x256xf32>, i32 -> vector<8x256xf32>
    %c7_170 = arith.constant 7 : index
    %c0_171 = arith.constant 0 : index
    %c0_172 = arith.constant 0 : index
    %216 = vector.load %arg9[%c7_170, %c0_171, %c0_172] : memref<9x1x256xf32, #tpu.memory_space<vmem>>, vector<1x1x256xf32>
    %217 = vector.shape_cast %216 : vector<1x1x256xf32> to vector<1x256xf32>
    %218 = vector.broadcast %217 : vector<1x256xf32> to vector<8x256xf32>
    %219 = arith.mulf %215, %218 : vector<8x256xf32>
    %c200 = arith.constant 200 : index
    %c0_173 = arith.constant 0 : index
    %220 = vector.load %arg11[%c200, %c0_173] : memref<360x256xf32, #tpu.memory_space<vmem>>, vector<8x256xf32>
    tpu.vector_store %arg11[%c200, %c0_173], %219 {strides = array<i32>} : memref<360x256xf32, #tpu.memory_space<vmem>>, vector<8x256xf32>,
    %c239_i32_174 = arith.constant 239 : i32
    %221 = tpu.dynamic_rotate %177 by %c239_i32_174 dim 1 : vector<8x256xf32>, i32 -> vector<8x256xf32>
    %c8_175 = arith.constant 8 : index
    %c0_176 = arith.constant 0 : index
    %c0_177 = arith.constant 0 : index
    %222 = vector.load %arg9[%c8_175, %c0_176, %c0_177] : memref<9x1x256xf32, #tpu.memory_space<vmem>>, vector<1x1x256xf32>
    %223 = vector.shape_cast %222 : vector<1x1x256xf32> to vector<1x256xf32>
    %224 = vector.broadcast %223 : vector<1x256xf32> to vector<8x256xf32>
    %225 = arith.mulf %221, %224 : vector<8x256xf32>
    %c208 = arith.constant 208 : index
    %c0_178 = arith.constant 0 : index
    %226 = vector.load %arg11[%c208, %c0_178] : memref<360x256xf32, #tpu.memory_space<vmem>>, vector<8x256xf32>
    tpu.vector_store %arg11[%c208, %c0_178], %225 {strides = array<i32>} : memref<360x256xf32, #tpu.memory_space<vmem>>, vector<8x256xf32>,
    %c0_179 = arith.constant 0 : index
    %c0_180 = arith.constant 0 : index
    %227 = vector.load %arg6[%c0_179, %c0_180] : memref<8x216xf32, #tpu.memory_space<vmem>>, vector<8x216xf32>
    %c0_181 = arith.constant 0 : index
    %c0_182 = arith.constant 0 : index
    %228 = vector.load %arg11[%c0_181, %c0_182] : memref<360x256xf32, #tpu.memory_space<vmem>>, vector<216x256xf32>
    %cst_183 = arith.constant dense<0.000000e+00> : vector<8x256xf32>
    %229 = tpu.matmul %227, %228, %cst_183 {dimension_numbers = #tpu.dot_dimension_numbers<[1], [0], [0], [1], [0, 0, 1, 1], [], []>} : vector<8x216xf32>, vector<216x256xf32>, vector<8x256xf32> -> vector<8x256xf32>
    %c3_184 = arith.constant 3 : index
    %c0_185 = arith.constant 0 : index
    %c0_186 = arith.constant 0 : index
    %230 = vector.load %arg8[%c3_184, %c0_185, %c0_186] : memref<5x8x1xf32, #tpu.memory_space<vmem>>, vector<1x8x1xf32>
    %231 = vector.shape_cast %230 : vector<1x8x1xf32> to vector<8x1xf32>
    %232 = vector.broadcast %231 : vector<8x1xf32> to vector<8x256xf32>
    %233 = arith.addf %229, %232 : vector<8x256xf32>
    %cst_187 = arith.constant 0.000000e+00 : f32
    %234 = vector.broadcast %cst_187 : f32 to vector<8x256xf32>
    %235 = arith.maximumf %233, %234 : vector<8x256xf32>
    %c17_i32_188 = arith.constant 17 : i32
    %236 = tpu.dynamic_rotate %235 by %c17_i32_188 dim 1 : vector<8x256xf32>, i32 -> vector<8x256xf32>
    %c0_189 = arith.constant 0 : index
    %c0_190 = arith.constant 0 : index
    %c0_191 = arith.constant 0 : index
    %237 = vector.load %arg9[%c0_189, %c0_190, %c0_191] : memref<9x1x256xf32, #tpu.memory_space<vmem>>, vector<1x1x256xf32>
    %238 = vector.shape_cast %237 : vector<1x1x256xf32> to vector<1x256xf32>
    %239 = vector.broadcast %238 : vector<1x256xf32> to vector<8x256xf32>
    %240 = arith.mulf %236, %239 : vector<8x256xf32>
    %c216 = arith.constant 216 : index
    %c0_192 = arith.constant 0 : index
    %241 = vector.load %arg11[%c216, %c0_192] : memref<360x256xf32, #tpu.memory_space<vmem>>, vector<8x256xf32>
    tpu.vector_store %arg11[%c216, %c0_192], %240 {strides = array<i32>} : memref<360x256xf32, #tpu.memory_space<vmem>>, vector<8x256xf32>,
    %c16_i32_193 = arith.constant 16 : i32
    %242 = tpu.dynamic_rotate %235 by %c16_i32_193 dim 1 : vector<8x256xf32>, i32 -> vector<8x256xf32>
    %c1_194 = arith.constant 1 : index
    %c0_195 = arith.constant 0 : index
    %c0_196 = arith.constant 0 : index
    %243 = vector.load %arg9[%c1_194, %c0_195, %c0_196] : memref<9x1x256xf32, #tpu.memory_space<vmem>>, vector<1x1x256xf32>
    %244 = vector.shape_cast %243 : vector<1x1x256xf32> to vector<1x256xf32>
    %245 = vector.broadcast %244 : vector<1x256xf32> to vector<8x256xf32>
    %246 = arith.mulf %242, %245 : vector<8x256xf32>
    %c224 = arith.constant 224 : index
    %c0_197 = arith.constant 0 : index
    %247 = vector.load %arg11[%c224, %c0_197] : memref<360x256xf32, #tpu.memory_space<vmem>>, vector<8x256xf32>
    tpu.vector_store %arg11[%c224, %c0_197], %246 {strides = array<i32>} : memref<360x256xf32, #tpu.memory_space<vmem>>, vector<8x256xf32>,
    %c15_i32_198 = arith.constant 15 : i32
    %248 = tpu.dynamic_rotate %235 by %c15_i32_198 dim 1 : vector<8x256xf32>, i32 -> vector<8x256xf32>
    %c2_199 = arith.constant 2 : index
    %c0_200 = arith.constant 0 : index
    %c0_201 = arith.constant 0 : index
    %249 = vector.load %arg9[%c2_199, %c0_200, %c0_201] : memref<9x1x256xf32, #tpu.memory_space<vmem>>, vector<1x1x256xf32>
    %250 = vector.shape_cast %249 : vector<1x1x256xf32> to vector<1x256xf32>
    %251 = vector.broadcast %250 : vector<1x256xf32> to vector<8x256xf32>
    %252 = arith.mulf %248, %251 : vector<8x256xf32>
    %c232 = arith.constant 232 : index
    %c0_202 = arith.constant 0 : index
    %253 = vector.load %arg11[%c232, %c0_202] : memref<360x256xf32, #tpu.memory_space<vmem>>, vector<8x256xf32>
    tpu.vector_store %arg11[%c232, %c0_202], %252 {strides = array<i32>} : memref<360x256xf32, #tpu.memory_space<vmem>>, vector<8x256xf32>,
    %c1_i32_203 = arith.constant 1 : i32
    %254 = tpu.dynamic_rotate %235 by %c1_i32_203 dim 1 : vector<8x256xf32>, i32 -> vector<8x256xf32>
    %c3_204 = arith.constant 3 : index
    %c0_205 = arith.constant 0 : index
    %c0_206 = arith.constant 0 : index
    %255 = vector.load %arg9[%c3_204, %c0_205, %c0_206] : memref<9x1x256xf32, #tpu.memory_space<vmem>>, vector<1x1x256xf32>
    %256 = vector.shape_cast %255 : vector<1x1x256xf32> to vector<1x256xf32>
    %257 = vector.broadcast %256 : vector<1x256xf32> to vector<8x256xf32>
    %258 = arith.mulf %254, %257 : vector<8x256xf32>
    %c240 = arith.constant 240 : index
    %c0_207 = arith.constant 0 : index
    %259 = vector.load %arg11[%c240, %c0_207] : memref<360x256xf32, #tpu.memory_space<vmem>>, vector<8x256xf32>
    tpu.vector_store %arg11[%c240, %c0_207], %258 {strides = array<i32>} : memref<360x256xf32, #tpu.memory_space<vmem>>, vector<8x256xf32>,
    %c248 = arith.constant 248 : index
    %c0_208 = arith.constant 0 : index
    %260 = vector.load %arg11[%c248, %c0_208] : memref<360x256xf32, #tpu.memory_space<vmem>>, vector<8x256xf32>
    tpu.vector_store %arg11[%c248, %c0_208], %235 {strides = array<i32>} : memref<360x256xf32, #tpu.memory_space<vmem>>, vector<8x256xf32>,
    %c255_i32_209 = arith.constant 255 : i32
    %261 = tpu.dynamic_rotate %235 by %c255_i32_209 dim 1 : vector<8x256xf32>, i32 -> vector<8x256xf32>
    %c5_210 = arith.constant 5 : index
    %c0_211 = arith.constant 0 : index
    %c0_212 = arith.constant 0 : index
    %262 = vector.load %arg9[%c5_210, %c0_211, %c0_212] : memref<9x1x256xf32, #tpu.memory_space<vmem>>, vector<1x1x256xf32>
    %263 = vector.shape_cast %262 : vector<1x1x256xf32> to vector<1x256xf32>
    %264 = vector.broadcast %263 : vector<1x256xf32> to vector<8x256xf32>
    %265 = arith.mulf %261, %264 : vector<8x256xf32>
    %c256 = arith.constant 256 : index
    %c0_213 = arith.constant 0 : index
    %266 = vector.load %arg11[%c256, %c0_213] : memref<360x256xf32, #tpu.memory_space<vmem>>, vector<8x256xf32>
    tpu.vector_store %arg11[%c256, %c0_213], %265 {strides = array<i32>} : memref<360x256xf32, #tpu.memory_space<vmem>>, vector<8x256xf32>,
    %c241_i32_214 = arith.constant 241 : i32
    %267 = tpu.dynamic_rotate %235 by %c241_i32_214 dim 1 : vector<8x256xf32>, i32 -> vector<8x256xf32>
    %c6_215 = arith.constant 6 : index
    %c0_216 = arith.constant 0 : index
    %c0_217 = arith.constant 0 : index
    %268 = vector.load %arg9[%c6_215, %c0_216, %c0_217] : memref<9x1x256xf32, #tpu.memory_space<vmem>>, vector<1x1x256xf32>
    %269 = vector.shape_cast %268 : vector<1x1x256xf32> to vector<1x256xf32>
    %270 = vector.broadcast %269 : vector<1x256xf32> to vector<8x256xf32>
    %271 = arith.mulf %267, %270 : vector<8x256xf32>
    %c264 = arith.constant 264 : index
    %c0_218 = arith.constant 0 : index
    %272 = vector.load %arg11[%c264, %c0_218] : memref<360x256xf32, #tpu.memory_space<vmem>>, vector<8x256xf32>
    tpu.vector_store %arg11[%c264, %c0_218], %271 {strides = array<i32>} : memref<360x256xf32, #tpu.memory_space<vmem>>, vector<8x256xf32>,
    %c240_i32_219 = arith.constant 240 : i32
    %273 = tpu.dynamic_rotate %235 by %c240_i32_219 dim 1 : vector<8x256xf32>, i32 -> vector<8x256xf32>
    %c7_220 = arith.constant 7 : index
    %c0_221 = arith.constant 0 : index
    %c0_222 = arith.constant 0 : index
    %274 = vector.load %arg9[%c7_220, %c0_221, %c0_222] : memref<9x1x256xf32, #tpu.memory_space<vmem>>, vector<1x1x256xf32>
    %275 = vector.shape_cast %274 : vector<1x1x256xf32> to vector<1x256xf32>
    %276 = vector.broadcast %275 : vector<1x256xf32> to vector<8x256xf32>
    %277 = arith.mulf %273, %276 : vector<8x256xf32>
    %c272 = arith.constant 272 : index
    %c0_223 = arith.constant 0 : index
    %278 = vector.load %arg11[%c272, %c0_223] : memref<360x256xf32, #tpu.memory_space<vmem>>, vector<8x256xf32>
    tpu.vector_store %arg11[%c272, %c0_223], %277 {strides = array<i32>} : memref<360x256xf32, #tpu.memory_space<vmem>>, vector<8x256xf32>,
    %c239_i32_224 = arith.constant 239 : i32
    %279 = tpu.dynamic_rotate %235 by %c239_i32_224 dim 1 : vector<8x256xf32>, i32 -> vector<8x256xf32>
    %c8_225 = arith.constant 8 : index
    %c0_226 = arith.constant 0 : index
    %c0_227 = arith.constant 0 : index
    %280 = vector.load %arg9[%c8_225, %c0_226, %c0_227] : memref<9x1x256xf32, #tpu.memory_space<vmem>>, vector<1x1x256xf32>
    %281 = vector.shape_cast %280 : vector<1x1x256xf32> to vector<1x256xf32>
    %282 = vector.broadcast %281 : vector<1x256xf32> to vector<8x256xf32>
    %283 = arith.mulf %279, %282 : vector<8x256xf32>
    %c280 = arith.constant 280 : index
    %c0_228 = arith.constant 0 : index
    %284 = vector.load %arg11[%c280, %c0_228] : memref<360x256xf32, #tpu.memory_space<vmem>>, vector<8x256xf32>
    tpu.vector_store %arg11[%c280, %c0_228], %283 {strides = array<i32>} : memref<360x256xf32, #tpu.memory_space<vmem>>, vector<8x256xf32>,
    %c0_229 = arith.constant 0 : index
    %c0_230 = arith.constant 0 : index
    %285 = vector.load %arg7[%c0_229, %c0_230] : memref<8x288xf32, #tpu.memory_space<vmem>>, vector<8x288xf32>
    %c0_231 = arith.constant 0 : index
    %c0_232 = arith.constant 0 : index
    %286 = vector.load %arg11[%c0_231, %c0_232] : memref<360x256xf32, #tpu.memory_space<vmem>>, vector<288x256xf32>
    %cst_233 = arith.constant dense<0.000000e+00> : vector<8x256xf32>
    %287 = tpu.matmul %285, %286, %cst_233 {dimension_numbers = #tpu.dot_dimension_numbers<[1], [0], [0], [1], [0, 0, 1, 1], [], []>} : vector<8x288xf32>, vector<288x256xf32>, vector<8x256xf32> -> vector<8x256xf32>
    %c4 = arith.constant 4 : index
    %c0_234 = arith.constant 0 : index
    %c0_235 = arith.constant 0 : index
    %288 = vector.load %arg8[%c4, %c0_234, %c0_235] : memref<5x8x1xf32, #tpu.memory_space<vmem>>, vector<1x8x1xf32>
    %289 = vector.shape_cast %288 : vector<1x8x1xf32> to vector<8x1xf32>
    %290 = vector.broadcast %289 : vector<8x1xf32> to vector<8x256xf32>
    %291 = arith.addf %287, %290 : vector<8x256xf32>
    %cst_236 = arith.constant 0.000000e+00 : f32
    %292 = vector.broadcast %cst_236 : f32 to vector<8x256xf32>
    %293 = arith.maximumf %291, %292 : vector<8x256xf32>
    %294 = arith.addf %3, %293 : vector<8x256xf32>
    %c0_237 = arith.constant 0 : index
    %c0_238 = arith.constant 0 : index
    %295 = vector.load %arg12[%c0_237, %c0_238] : memref<8x256xf32, #tpu.memory_space<vmem>>, vector<8x256xf32>
    tpu.vector_store %arg12[%c0_237, %c0_238], %294 {strides = array<i32>} : memref<8x256xf32, #tpu.memory_space<vmem>>, vector<8x256xf32>,
    %c0_239 = arith.constant 0 : index
    %c0_240 = arith.constant 0 : index
    %c0_241 = arith.constant 0 : index
    %296 = vector.load %arg10[%c0_239, %c0_240, %c0_241] : memref<1x8x256xf32, #tpu.memory_space<vmem>>, vector<1x8x256xf32>
    %297 = vector.shape_cast %296 : vector<1x8x256xf32> to vector<8x256xf32>
    %298 = vector.shape_cast %294 : vector<8x256xf32> to vector<1x8x256xf32>
    tpu.vector_store %arg10[%c0_239, %c0_240, %c0_241], %298 {strides = array<i32>} : memref<1x8x256xf32, #tpu.memory_space<vmem>>, vector<1x8x256xf32>,
    return
  }
  func.func @transform_0(%arg0: i32, %arg1: i32) -> (i32, i32) {
    %c0_i32 = arith.constant 0 : i32
    %c0_i32_0 = arith.constant 0 : i32
    return %c0_i32, %arg0 : i32, i32
  }
  func.func @transform_1(%arg0: i32, %arg1: i32) -> (i32, i32) {
    %c0_i32 = arith.constant 0 : i32
    %c0_i32_0 = arith.constant 0 : i32
    %c0_i32_1 = arith.constant 0 : i32
    return %c0_i32, %c0_i32_0 : i32, i32
  }
  func.func @transform_2(%arg0: i32, %arg1: i32) -> (i32, i32) {
    %c0_i32 = arith.constant 0 : i32
    %c0_i32_0 = arith.constant 0 : i32
    %c0_i32_1 = arith.constant 0 : i32
    return %c0_i32, %c0_i32_0 : i32, i32
  }
  func.func @transform_3(%arg0: i32, %arg1: i32) -> (i32, i32) {
    %c0_i32 = arith.constant 0 : i32
    %c0_i32_0 = arith.constant 0 : i32
    %c0_i32_1 = arith.constant 0 : i32
    return %c0_i32, %c0_i32_0 : i32, i32
  }
  func.func @transform_4(%arg0: i32, %arg1: i32) -> (i32, i32) {
    %c0_i32 = arith.constant 0 : i32
    %c0_i32_0 = arith.constant 0 : i32
    %c0_i32_1 = arith.constant 0 : i32
    return %c0_i32, %c0_i32_0 : i32, i32
  }
  func.func @transform_5(%arg0: i32, %arg1: i32) -> (i32, i32) {
    %c0_i32 = arith.constant 0 : i32
    %c0_i32_0 = arith.constant 0 : i32
    %c0_i32_1 = arith.constant 0 : i32
    return %c0_i32, %c0_i32_0 : i32, i32
  }
  func.func @transform_6(%arg0: i32, %arg1: i32) -> (i32, i32, i32) {
    %c0_i32 = arith.constant 0 : i32
    %c0_i32_0 = arith.constant 0 : i32
    %c0_i32_1 = arith.constant 0 : i32
    %c0_i32_2 = arith.constant 0 : i32
    return %c0_i32, %c0_i32_0, %c0_i32_1 : i32, i32, i32
  }
  func.func @transform_7(%arg0: i32, %arg1: i32) -> (i32, i32, i32) {
    %c0_i32 = arith.constant 0 : i32
    %c0_i32_0 = arith.constant 0 : i32
    %c0_i32_1 = arith.constant 0 : i32
    %c0_i32_2 = arith.constant 0 : i32
    return %c0_i32, %c0_i32_0, %c0_i32_1 : i32, i32, i32
  }
  func.func @transform_8(%arg0: i32, %arg1: i32) -> (i32, i32, i32) {
    %c0_i32 = arith.constant 0 : i32
    %c0_i32_0 = arith.constant 0 : i32
    return %arg1, %c0_i32, %arg0 : i32, i32, i32
  }
}

</mosaic_0001>

<llo_original>
// kernel: rrdb_pallas.1
$region0: #{rrdb_pallas.1}
  #allocation0 [shape = 'u32[]', space=smem, size = 0x4, offset = 0x4, fixed_abs, tag = 'smem constant byte address 0x4 - core index']
  #allocation1 [shape = 'u32[72,128]{1,0:T(1,128)}', space=vmem, size = 0x9000, scoped, tag = 'internal scratch']
  #allocation2 [shape = 'f32[360,256]{1,0:T(8,128)}', space=vmem, size = 0x5a000, scoped, tag = 'scratch operand']
  #allocation3 [shape = 'f32[8,256]{1,0:T(8,128)}', space=vmem, size = 0x2000, scoped, tag = 'scratch operand']
  %s0 = inlined_call_operand.vmem [shape: f32[8,512], index: 0, kind: input, shape index: {}]
  %s1 = inlined_call_operand.vmem [shape: f32[8,72], index: 1, kind: input, shape index: {}]
  %s2 = inlined_call_operand.vmem [shape: f32[8,72], index: 2, kind: input, shape index: {}]
  %s3 = inlined_call_operand.vmem [shape: f32[8,144], index: 3, kind: input, shape index: {}]
  %s4 = inlined_call_operand.vmem [shape: f32[8,216], index: 4, kind: input, shape index: {}]
  %s5 = inlined_call_operand.vmem [shape: f32[8,288], index: 5, kind: input, shape index: {}]
  %s6 = inlined_call_operand.vmem [shape: f32[5,8,1], index: 6, kind: input, shape index: {}]
  %s7 = inlined_call_operand.vmem [shape: f32[9,1,256], index: 7, kind: input, shape index: {}]
  %s8 = inlined_call_operand.vmem [shape: f32[3,8,512], index: 8, kind: output, shape index: {}]
  %s9 = sld [smem:[#allocation0]]
  $region69: #{rrdb_pallas.1} parent=0
    _
  %s11 = ssub.s32 1, %s9
  %s12 = scalar_select 0, %s11, %s9
  loop: start=0, step=1, limit=8
  $region2: #{rrdb_pallas.1} parent=0 // loop_pre_header
    _
  $region3: #{rrdb_pallas.1} parent=0 // loop_header
    %s14 = sphi 0, %s18
    %p15 = scmp.ge.s32.totalorder %s14, 8
    %s21 = sphi 0, %s33
    %s22 = sphi 0, %s29
    %s23 = sphi 0, %s21
    %s24 = sphi 0, %s22
    %s25 = sphi 0, %s23
    %s26 = sphi 0, %s24
    %s36 = sphi 0, %s38
    %s39 = sphi 0, %s36
    %s40 = sphi 0, %s39
    %s56 = sphi 0, %s40
    %s60 = sphi 0, %s60
    %s62 = sphi 0, %s60
    %s63 = sphi 0, %s62
    %s77 = sphi 0, %s63
    %s81 = sphi 0, %s81
    %s83 = sphi 0, %s81
    %s84 = sphi 0, %s83
    %s98 = sphi 0, %s84
    %s102 = sphi 0, %s102
    %s104 = sphi 0, %s102
    %s105 = sphi 0, %s104
    %s119 = sphi 0, %s105
    %s123 = sphi 0, %s123
    %s125 = sphi 0, %s123
    %s126 = sphi 0, %s125
    %s140 = sphi 0, %s126
    %s144 = sphi 0, %s144
    %s146 = sphi 0, %s144
    %s147 = sphi 0, %s146
    %s161 = sphi 0, %s147
    %s165 = sphi 0, %s165
    %s167 = sphi 0, %s165
    %s168 = sphi 0, %s167
    %s182 = sphi 0, %s168
    %s186 = sphi 0, %s186
    %s188 = sphi 0, %s186
    %s189 = sphi 0, %s188
    %s203 = sphi 0, %s189
    %s211 = sphi 0, %s213
    %s214 = sphi 0, %s211
    %s215 = sphi 0, %s214
    %s231 = sphi 0, %s215
  $region4: #{rrdb_pallas.1} parent=0 // loop_header_branch
    %17 = sbr.rel (%p15) target = $region8
  $region5: #{rrdb_pallas.1} parent=0 // loop_body
    %s19 = ssub.s32 %s14, 1
    %s20 = ssub.s32 %s14, 2
    %s27 = sadd.s32 1, %s22
    %p28 = scmp.ge.s32.totalorder %s27, 3
    %s29 = scalar_select %p28, 0, %s27
    %s30 = sadd.s32 1, %s21
    %s31 = scalar_select %p28, %s30, %s21
    %p32 = scmp.ge.s32.totalorder %s31, 2
    %s33 = scalar_select %p32, 0, %s31
    %s34 = ssub.s32 %s21, %s33
    %p35 = scmp.eq.s32.totalorder %s34, 0
    %s37 = sadd.s32 %s36, 1
    %s38 = scalar_select %p35, %s36, %s37
    %p41 = pneg %p35
    %p42 = scmp.eq.s32.totalorder %s14, 5
    %p43 = por %p41, %p42
    %p44 = scmp.ne.s32.totalorder %s36, %s39
    %p45 = scmp.eq.s32.totalorder %s14, 0
    %p46 = por %p44, %p45
    %p47 = scmp.ne.s32.totalorder %s36, %s39
    %p48 = scmp.eq.s32.totalorder %s19, 5
    %p49 = por %p47, %p48
    %p50 = scmp.ne.s32.totalorder %s39, %s40
    %p51 = scmp.eq.s32.totalorder %s19, 0
    %p52 = por %p50, %p51
    %p53 = scmp.ne.s32.totalorder %s39, %s40
    %p54 = scmp.eq.s32.totalorder %s20, 5
    %p55 = por %p53, %p54
    %p57 = scmp.ne.s32.totalorder %s40, %s56
    %p58 = scmp.eq.s32.totalorder %s20, 0
    %p59 = por %p57, %p58
    %s61 = sadd.s32 %s60, 1
    %p64 = scmp.eq.s32.totalorder %s14, 5
    %p65 = scmp.ne.s32.totalorder %s60, %s62
    %p66 = scmp.eq.s32.totalorder %s14, 0
    %p67 = por %p65, %p66
    %p68 = scmp.ne.s32.totalorder %s60, %s62
    %p69 = scmp.eq.s32.totalorder %s19, 5
    %p70 = por %p68, %p69
    %p71 = scmp.ne.s32.totalorder %s62, %s63
    %p72 = scmp.eq.s32.totalorder %s19, 0
    %p73 = por %p71, %p72
    %p74 = scmp.ne.s32.totalorder %s62, %s63
    %p75 = scmp.eq.s32.totalorder %s20, 5
    %p76 = por %p74, %p75
    %p78 = scmp.ne.s32.totalorder %s63, %s77
    %p79 = scmp.eq.s32.totalorder %s20, 0
    %p80 = por %p78, %p79
    %s82 = sadd.s32 %s81, 1
    %p85 = scmp.eq.s32.totalorder %s14, 5
    %p86 = scmp.ne.s32.totalorder %s81, %s83
    %p87 = scmp.eq.s32.totalorder %s14, 0
    %p88 = por %p86, %p87
    %p89 = scmp.ne.s32.totalorder %s81, %s83
    %p90 = scmp.eq.s32.totalorder %s19, 5
    %p91 = por %p89, %p90
    %p92 = scmp.ne.s32.totalorder %s83, %s84
    %p93 = scmp.eq.s32.totalorder %s19, 0
    %p94 = por %p92, %p93
    %p95 = scmp.ne.s32.totalorder %s83, %s84
    %p96 = scmp.eq.s32.totalorder %s20, 5
    %p97 = por %p95, %p96
    %p99 = scmp.ne.s32.totalorder %s84, %s98
    %p100 = scmp.eq.s32.totalorder %s20, 0
    %p101 = por %p99, %p100
    %s103 = sadd.s32 %s102, 1
    %p106 = scmp.eq.s32.totalorder %s14, 5
    %p107 = scmp.ne.s32.totalorder %s102, %s104
    %p108 = scmp.eq.s32.totalorder %s14, 0
    %p109 = por %p107, %p108
    %p110 = scmp.ne.s32.totalorder %s102, %s104
    %p111 = scmp.eq.s32.totalorder %s19, 5
    %p112 = por %p110, %p111
    %p113 = scmp.ne.s32.totalorder %s104, %s105
    %p114 = scmp.eq.s32.totalorder %s19, 0
    %p115 = por %p113, %p114
    %p116 = scmp.ne.s32.totalorder %s104, %s105
    %p117 = scmp.eq.s32.totalorder %s20, 5
    %p118 = por %p116, %p117
    %p120 = scmp.ne.s32.totalorder %s105, %s119
    %p121 = scmp.eq.s32.totalorder %s20, 0
    %p122 = por %p120, %p121
    %s124 = sadd.s32 %s123, 1
    %p127 = scmp.eq.s32.totalorder %s14, 5
    %p128 = scmp.ne.s32.totalorder %s123, %s125
    %p129 = scmp.eq.s32.totalorder %s14, 0
    %p130 = por %p128, %p129
    %p131 = scmp.ne.s32.totalorder %s123, %s125
    %p132 = scmp.eq.s32.totalorder %s19, 5
    %p133 = por %p131, %p132
    %p134 = scmp.ne.s32.totalorder %s125, %s126
    %p135 = scmp.eq.s32.totalorder %s19, 0
    %p136 = por %p134, %p135
    %p137 = scmp.ne.s32.totalorder %s125, %s126
    %p138 = scmp.eq.s32.totalorder %s20, 5
    %p139 = por %p137, %p138
    %p141 = scmp.ne.s32.totalorder %s126, %s140
    %p142 = scmp.eq.s32.totalorder %s20, 0
    %p143 = por %p141, %p142
    %s145 = sadd.s32 %s144, 1
    %p148 = scmp.eq.s32.totalorder %s14, 5
    %p149 = scmp.ne.s32.totalorder %s144, %s146
    %p150 = scmp.eq.s32.totalorder %s14, 0
    %p151 = por %p149, %p150
    %p152 = scmp.ne.s32.totalorder %s144, %s146
    %p153 = scmp.eq.s32.totalorder %s19, 5
    %p154 = por %p152, %p153
    %p155 = scmp.ne.s32.totalorder %s146, %s147
    %p156 = scmp.eq.s32.totalorder %s19, 0
    %p157 = por %p155, %p156
    %p158 = scmp.ne.s32.totalorder %s146, %s147
    %p159 = scmp.eq.s32.totalorder %s20, 5
    %p160 = por %p158, %p159
    %p162 = scmp.ne.s32.totalorder %s147, %s161
    %p163 = scmp.eq.s32.totalorder %s20, 0
    %p164 = por %p162, %p163
    %s166 = sadd.s32 %s165, 1
    %p169 = scmp.eq.s32.totalorder %s14, 5
    %p170 = scmp.ne.s32.totalorder %s165, %s167
    %p171 = scmp.eq.s32.totalorder %s14, 0
    %p172 = por %p170, %p171
    %p173 = scmp.ne.s32.totalorder %s165, %s167
    %p174 = scmp.eq.s32.totalorder %s19, 5
    %p175 = por %p173, %p174
    %p176 = scmp.ne.s32.totalorder %s167, %s168
    %p177 = scmp.eq.s32.totalorder %s19, 0
    %p178 = por %p176, %p177
    %p179 = scmp.ne.s32.totalorder %s167, %s168
    %p180 = scmp.eq.s32.totalorder %s20, 5
    %p181 = por %p179, %p180
    %p183 = scmp.ne.s32.totalorder %s168, %s182
    %p184 = scmp.eq.s32.totalorder %s20, 0
    %p185 = por %p183, %p184
    %s187 = sadd.s32 %s186, 1
    %p190 = scmp.eq.s32.totalorder %s14, 5
    %p191 = scmp.ne.s32.totalorder %s186, %s188
    %p192 = scmp.eq.s32.totalorder %s14, 0
    %p193 = por %p191, %p192
    %p194 = scmp.ne.s32.totalorder %s186, %s188
    %p195 = scmp.eq.s32.totalorder %s19, 5
    %p196 = por %p194, %p195
    %p197 = scmp.ne.s32.totalorder %s188, %s189
    %p198 = scmp.eq.s32.totalorder %s19, 0
    %p199 = por %p197, %p198
    %p200 = scmp.ne.s32.totalorder %s188, %s189
    %p201 = scmp.eq.s32.totalorder %s20, 5
    %p202 = por %p200, %p201
    %p204 = scmp.ne.s32.totalorder %s189, %s203
    %p205 = scmp.eq.s32.totalorder %s20, 0
    %p206 = por %p204, %p205
    %s207 = ssub.s32 %s22, %s29
    %s208 = ssub.s32 %s21, %s33
    %s209 = sor.u32 %s207, %s208
    %p210 = scmp.eq.s32.totalorder %s209, 0
    %s212 = sadd.s32 %s211, 1
    %s213 = scalar_select %p210, %s211, %s212
    %p216 = pneg %p210
    %p217 = scmp.eq.s32.totalorder %s14, 5
    %p218 = por %p216, %p217
    %p219 = scmp.ne.s32.totalorder %s211, %s214
    %p220 = scmp.eq.s32.totalorder %s14, 0
    %p221 = por %p219, %p220
    %p222 = scmp.ne.s32.totalorder %s211, %s214
    %p223 = scmp.eq.s32.totalorder %s19, 5
    %p224 = por %p222, %p223
    %p225 = scmp.ne.s32.totalorder %s214, %s215
    %p226 = scmp.eq.s32.totalorder %s19, 0
    %p227 = por %p225, %p226
    %p228 = scmp.ne.s32.totalorder %s214, %s215
    %p229 = scmp.eq.s32.totalorder %s20, 5
    %p230 = por %p228, %p229
    %p232 = scmp.ne.s32.totalorder %s215, %s231
    %p233 = scmp.eq.s32.totalorder %s20, 0
    %p234 = por %p232, %p233
    %p235 = scmp.le.s32.totalorder 1, %s14
    %p236 = scmp.lt.s32.totalorder %s14, 7
    %p237 = pnand %p235, %p236
    %p238 = pneg %p237
    // Predicated region
    $region9: #{rrdb_pallas.1} parent=5 // pred_check
      _
    $region10: #{rrdb_pallas.1} parent=5 // pred_check_branch
      %240 = sbr.rel (%p237) target = $region12
    $region11: #{rrdb_pallas.1} parent=5 // pred_region
      %s241 = ssub.s32 %s14, 1
      // Predicated region
      $region13: #{rrdb_pallas.1} parent=11 // pred_check
        %p242 = pneg %p73
      $region14: #{rrdb_pallas.1} parent=11 // pred_check_branch
        %244 = sbr.rel (%p242) target = $region16
      $region15: #{rrdb_pallas.1} parent=11 // pred_region
        _
      $region16: #{rrdb_pallas.1} parent=11 // pred_fallthru
        _
      // Predicated region
      $region17: #{rrdb_pallas.1} parent=11 // pred_check
        %p245 = pneg %p94
      $region18: #{rrdb_pallas.1} parent=11 // pred_check_branch
        %247 = sbr.rel (%p245) target = $region20
      $region19: #{rrdb_pallas.1} parent=11 // pred_region
        _
      $region20: #{rrdb_pallas.1} parent=11 // pred_fallthru
        _
      // Predicated region
      $region21: #{rrdb_pallas.1} parent=11 // pred_check
        %p248 = pneg %p115
      $region22: #{rrdb_pallas.1} parent=11 // pred_check_branch
        %250 = sbr.rel (%p248) target = $region24
      $region23: #{rrdb_pallas.1} parent=11 // pred_region
        _
      $region24: #{rrdb_pallas.1} parent=11 // pred_fallthru
        _
      // Predicated region
      $region25: #{rrdb_pallas.1} parent=11 // pred_check
        %p251 = pneg %p136
      $region26: #{rrdb_pallas.1} parent=11 // pred_check_branch
        %253 = sbr.rel (%p251) target = $region28
      $region27: #{rrdb_pallas.1} parent=11 // pred_region
        _
      $region28: #{rrdb_pallas.1} parent=11 // pred_fallthru
        _
      // Predicated region
      $region29: #{rrdb_pallas.1} parent=11 // pred_check
        %p254 = pneg %p157
      $region30: #{rrdb_pallas.1} parent=11 // pred_check_branch
        %256 = sbr.rel (%p254) target = $region32
      $region31: #{rrdb_pallas.1} parent=11 // pred_region
        _
      $region32: #{rrdb_pallas.1} parent=11 // pred_fallthru
        _
      // Predicated region
      $region33: #{rrdb_pallas.1} parent=11 // pred_check
        %p257 = pneg %p178
      $region34: #{rrdb_pallas.1} parent=11 // pred_check_branch
        %259 = sbr.rel (%p257) target = $region36
      $region35: #{rrdb_pallas.1} parent=11 // pred_region
        _
      $region36: #{rrdb_pallas.1} parent=11 // pred_fallthru
        _
      // Predicated region
      $region37: #{rrdb_pallas.1} parent=11 // pred_check
        %p260 = pneg %p199
      $region38: #{rrdb_pallas.1} parent=11 // pred_check_branch
        %262 = sbr.rel (%p260) target = $region40
      $region39: #{rrdb_pallas.1} parent=11 // pred_region
        _
      $region40: #{rrdb_pallas.1} parent=11 // pred_fallthru
        _
    $region12: #{rrdb_pallas.1} parent=5 // pred_fallthru
      _
    %p263 = scmp.lt.s32.totalorder %s14, 6
    // Predicated region
    $region41: #{rrdb_pallas.1} parent=5 // pred_check
      %p264 = pneg %p263
    $region42: #{rrdb_pallas.1} parent=5 // pred_check_branch
      %266 = sbr.rel (%p264) target = $region44
    $region43: #{rrdb_pallas.1} parent=5 // pred_region
      // Predicated region
      $region45: #{rrdb_pallas.1} parent=43 // pred_check
        %p267 = pneg %p46
      $region46: #{rrdb_pallas.1} parent=43 // pred_check_branch
        %269 = sbr.rel (%p267) target = $region48
      $region47: #{rrdb_pallas.1} parent=43 // pred_region
        %s270 = smul.u32 2, %s21
        %p271 = scmp.lt.s32.totalorder %s270, 3
        %s272 = scalar_select %p271, %s270, 3
        %s273 = smul.addr %s272, 8
        %s274 = scalar_lea.vmem %s0, %s273
        %s275 = smul.u32 2, %s21
      $region48: #{rrdb_pallas.1} parent=43 // pred_fallthru
        _
    $region44: #{rrdb_pallas.1} parent=5 // pred_fallthru
      _
    %p276 = scmp.le.s32.totalorder 1, %s14
    %p277 = scmp.lt.s32.totalorder %s14, 7
    %p278 = pnand %p276, %p277
    %p279 = pneg %p278
    // Predicated region
    $region49: #{rrdb_pallas.1} parent=5 // pred_check
      _
    $region50: #{rrdb_pallas.1} parent=5 // pred_check_branch
      %281 = sbr.rel (%p278) target = $region52
    $region51: #{rrdb_pallas.1} parent=5 // pred_region
      %s282 = ssub.s32 %s14, 1
      %s283 = smul.u32 2, %s23
      %p284 = scmp.lt.s32.totalorder %s283, 3
      %s285 = scalar_select %p284, %s283, 3
      %s286 = smul.addr %s285, 8
      %s287 = scalar_lea.vmem %s0, %s286
      %p288 = pneg %p52
      %p289 = pneg %p49
      %p290 = pneg %p73
      %p291 = pneg %p70
      %p292 = pneg %p94
      %p293 = pneg %p91
      %p294 = pneg %p115
      %p295 = pneg %p112
      %p296 = pneg %p136
      %p297 = pneg %p133
      %p298 = pneg %p157
      %p299 = pneg %p154
      %p300 = pneg %p178
      %p301 = pneg %p175
      %p302 = pneg %p199
      %p303 = pneg %p196
      %p304 = pneg %p227
      %p305 = pneg %p224
      %s306 = smul.u32 2, %s23
      %p307 = scmp.lt.s32.totalorder %s24, 2
      %s308 = scalar_select %p307, %s24, 2
      %p309 = scmp.lt.s32.totalorder %s306, 3
      %s310 = scalar_select %p309, %s306, 3
      %s311 = smul.addr %s308, 4
      %s312 = sadd.s32 %s310, %s311
      %s313 = smul.addr %s312, 8
      %s314 = scalar_lea.vmem %s8, %s313
      %s315 = smul.u32 2, %s23
      %p316 = scmp.lt.s32.totalorder %s315, 3
      %s317 = scalar_select %p316, %s315, 3
      %s318 = smul.addr %s317, 8
      %s319 = scalar_lea.vmem %s0, %s318
      %s320 = smul.u32 2, %s23
      %s321 = smul.u32 2, %s23
      %p322 = scmp.lt.s32.totalorder %s24, 2
      %s323 = scalar_select %p322, %s24, 2
      %p324 = scmp.lt.s32.totalorder %s321, 3
      %s325 = scalar_select %p324, %s321, 3
      %s326 = smul.addr %s323, 4
      %s327 = sadd.s32 %s325, %s326
      %s328 = smul.addr %s327, 8
      %s329 = scalar_lea.vmem %s8, %s328
      %s330 = smul.u32 2, %s23
      %p331 = scmp.eq.s32.totalorder %s24, 0
      // Predicated region
      $region53: #{rrdb_pallas.1} parent=51 // pred_check
        %p332 = pneg %p331
      $region54: #{rrdb_pallas.1} parent=51 // pred_check_branch
        %334 = sbr.rel (%p332) target = $region56
      $region55: #{rrdb_pallas.1} parent=51 // pred_region
        %v335 = vld [vmem:[%s319] sm:$0xff]
        %v336 = vld [vmem:[%s319 + $0x8] sm:$0xff]
        %337 = vst [vmem:[#allocation3] sm:$0xff] %v335
        %338 = vst [vmem:[#allocation3 + $0x8] sm:$0xff] %v336
      $region56: #{rrdb_pallas.1} parent=51 // pred_fallthru
        _
      %v339 = vld [vmem:[#allocation3] sm:$0xff]
      %v340 = vld [vmem:[#allocation3 + $0x8] sm:$0xff]
      %341 = vrot.lane.b32.xlu0 %v339, 17
      %v342 = vpop.permute.xlu0 %341
      %343 = vrot.lane.b32.xlu0 %v340, 17
      %v344 = vpop.permute.xlu0 %343
      %v345 = vlaneseq
      %v346 = vand.u32 %v345, 127
      %vm347 = vcmp.lt.s32.totalorder %v346, 17
      %v348 = vsel %vm347, %v342, %v344
      %v349 = vsel %vm347, %v344, %v342
      %v350 = vld [vmem:[%s7] sm:$0x3]
      %v352 = vperm.slane %v350, 0
      %v353 = vperm.slane %v350, 1
      %v356 = vmul.f32 %v349, %v352
      %v357 = vmul.f32 %v348, %v353
      %358 = vst [vmem:[#allocation2 + $0x240] sm:$0xff] %v356
      %359 = vst [vmem:[#allocation2 + $0x248] sm:$0xff] %v357
      %360 = vrot.lane.b32.xlu0 %v339, 16
      %v361 = vpop.permute.xlu0 %360
      %362 = vrot.lane.b32.xlu0 %v340, 16
      %v363 = vpop.permute.xlu0 %362
      %vm364 = vcmp.lt.s32.totalorder %v346, 16
      %v365 = vsel %vm364, %v361, %v363
      %v366 = vsel %vm364, %v363, %v361
      %s367 = scalar_lea.vmem %s7, 2
      %v368 = vld [vmem:[%s367] sm:$0x3]
      %v370 = vperm.slane %v368, 0
      %v371 = vperm.slane %v368, 1
      %v374 = vmul.f32 %v366, %v370
      %v375 = vmul.f32 %v365, %v371
      %376 = vst [vmem:[#allocation2 + $0x250] sm:$0xff] %v374
      %377 = vst [vmem:[#allocation2 + $0x258] sm:$0xff] %v375
      %378 = vrot.lane.b32.xlu0 %v339, 15
      %v379 = vpop.permute.xlu0 %378
      %380 = vrot.lane.b32.xlu0 %v340, 15
      %v381 = vpop.permute.xlu0 %380
      %vm382 = vcmp.lt.s32.totalorder %v346, 15
      %v383 = vsel %vm382, %v379, %v381
      %v384 = vsel %vm382, %v381, %v379
      %s385 = scalar_lea.vmem %s7, 4
      %v386 = vld [vmem:[%s385] sm:$0x3]
      %v388 = vperm.slane %v386, 0
      %v389 = vperm.slane %v386, 1
      %v392 = vmul.f32 %v384, %v388
      %v393 = vmul.f32 %v383, %v389
      %394 = vst [vmem:[#allocation2 + $0x260] sm:$0xff] %v392
      %395 = vst [vmem:[#allocation2 + $0x268] sm:$0xff] %v393
      %396 = vrot.lane.b32.xlu0 %v339, 1
      %v397 = vpop.permute.xlu0 %396
      %398 = vrot.lane.b32.xlu0 %v340, 1
      %v399 = vpop.permute.xlu0 %398
      %vm400 = vcmp.lt.s32.totalorder %v346, 1
      %v401 = vsel %vm400, %v397, %v399
      %v402 = vsel %vm400, %v399, %v397
      %s403 = scalar_lea.vmem %s7, 6
      %v404 = vld [vmem:[%s403] sm:$0x3]
      %v406 = vperm.slane %v404, 0
      %v407 = vperm.slane %v404, 1
      %v410 = vmul.f32 %v402, %v406
      %v411 = vmul.f32 %v401, %v407
      %412 = vst [vmem:[#allocation2 + $0x270] sm:$0xff] %v410
      %413 = vst [vmem:[#allocation2 + $0x278] sm:$0xff] %v411
      %414 = vst [vmem:[#allocation2 + $0x280] sm:$0xff] %v339
      %415 = vst [vmem:[#allocation2 + $0x288] sm:$0xff] %v340
      %416 = vrot.lane.b32.xlu0 %v339, 127
      %v417 = vpop.permute.xlu0 %416
      %418 = vrot.lane.b32.xlu0 %v340, 127
      %v419 = vpop.permute.xlu0 %418
      %vm420 = vcmp.lt.s32.totalorder %v346, 127
      %v421 = vsel %vm420, %v417, %v419
      %v422 = vsel %vm420, %v419, %v417
      %s423 = scalar_lea.vmem %s7, 10
      %v424 = vld [vmem:[%s423] sm:$0x3]
      %v426 = vperm.slane %v424, 0
      %v427 = vperm.slane %v424, 1
      %v430 = vmul.f32 %v421, %v426
      %v431 = vmul.f32 %v422, %v427
      %432 = vst [vmem:[#allocation2 + $0x290] sm:$0xff] %v430
      %433 = vst [vmem:[#allocation2 + $0x298] sm:$0xff] %v431
      %434 = vrot.lane.b32.xlu0 %v339, 113
      %v435 = vpop.permute.xlu0 %434
      %436 = vrot.lane.b32.xlu0 %v340, 113
      %v437 = vpop.permute.xlu0 %436
      %vm438 = vcmp.lt.s32.totalorder %v346, 113
      %v439 = vsel %vm438, %v435, %v437
      %v440 = vsel %vm438, %v437, %v435
      %s441 = scalar_lea.vmem %s7, 12
      %v442 = vld [vmem:[%s441] sm:$0x3]
      %v444 = vperm.slane %v442, 0
      %v445 = vperm.slane %v442, 1
      %v448 = vmul.f32 %v439, %v444
      %v449 = vmul.f32 %v440, %v445
      %450 = vst [vmem:[#allocation2 + $0x2a0] sm:$0xff] %v448
      %451 = vst [vmem:[#allocation2 + $0x2a8] sm:$0xff] %v449
      %452 = vrot.lane.b32.xlu0 %v339, 112
      %v453 = vpop.permute.xlu0 %452
      %454 = vrot.lane.b32.xlu0 %v340, 112
      %v455 = vpop.permute.xlu0 %454
      %vm456 = vcmp.lt.s32.totalorder %v346, 112
      %v457 = vsel %vm456, %v453, %v455
      %v458 = vsel %vm456, %v455, %v453
      %s459 = scalar_lea.vmem %s7, 14
      %v460 = vld [vmem:[%s459] sm:$0x3]
      %v462 = vperm.slane %v460, 0
      %v463 = vperm.slane %v460, 1
      %v466 = vmul.f32 %v457, %v462
      %v467 = vmul.f32 %v458, %v463
      %468 = vst [vmem:[#allocation2 + $0x2b0] sm:$0xff] %v466
      %469 = vst [vmem:[#allocation2 + $0x2b8] sm:$0xff] %v467
      %470 = vrot.lane.b32.xlu0 %v339, 111
      %v471 = vpop.permute.xlu0 %470
      %472 = vrot.lane.b32.xlu0 %v340, 111
      %v473 = vpop.permute.xlu0 %472
      %vm474 = vcmp.lt.s32.totalorder %v346, 111
      %v475 = vsel %vm474, %v471, %v473
      %v476 = vsel %vm474, %v473, %v471
      %s477 = scalar_lea.vmem %s7, 16
      %v478 = vld [vmem:[%s477] sm:$0x3]
      %v480 = vperm.slane %v478, 0
      %v481 = vperm.slane %v478, 1
      %v484 = vmul.f32 %v475, %v480
      %v485 = vmul.f32 %v476, %v481
      %486 = vst [vmem:[#allocation2 + $0x2c0] sm:$0xff] %v484
      %487 = vst [vmem:[#allocation2 + $0x2c8] sm:$0xff] %v485
      %v488 = vld [vmem:[%s1] sm:$0xff]
      %v489 = vld [vmem:[#allocation2 + $0x240] sm:$0xff]
      %v490 = vld [vmem:[#allocation2 + $0x248] sm:$0xff]
      %v491 = vld [vmem:[#allocation2 + $0x250] sm:$0xff]
      %v492 = vld [vmem:[#allocation2 + $0x258] sm:$0xff]
      %v493 = vld [vmem:[#allocation2 + $0x260] sm:$0xff]
      %v494 = vld [vmem:[#allocation2 + $0x268] sm:$0xff]
      %v495 = vld [vmem:[#allocation2 + $0x270] sm:$0xff]
      %v496 = vld [vmem:[#allocation2 + $0x278] sm:$0xff]
      %v497 = vld [vmem:[#allocation2 + $0x280] sm:$0xff]
      %v498 = vld [vmem:[#allocation2 + $0x288] sm:$0xff]
      %v499 = vld [vmem:[#allocation2 + $0x290] sm:$0xff]
      %v500 = vld [vmem:[#allocation2 + $0x298] sm:$0xff]
      %v501 = vld [vmem:[#allocation2 + $0x2a0] sm:$0xff]
      %v502 = vld [vmem:[#allocation2 + $0x2a8] sm:$0xff]
      %v503 = vld [vmem:[#allocation2 + $0x2b0] sm:$0xff]
      %v504 = vld [vmem:[#allocation2 + $0x2b8] sm:$0xff]
      %v505 = vld [vmem:[#allocation2 + $0x2c0] sm:$0xff]
      %v506 = vld [vmem:[#allocation2 + $0x2c8] sm:$0xff]
      %v507 = vld [vmem:[%s6] sm:$0xff]
      %509 = vset.pattern.permute.xlu0 0
      %510 = vperm.xlu0 %509, %v507
      %v511 = vpop.permute.xlu0 %510
      %vm513 = vcmask 588800
      %v515 = vsel %vm513, %v488, 0
      %517 = vmatpush.msra.mxu0 0.0
      %518 = vmatpush.msra.mxu0 0.0
      %519 = vmatpush.msra.mxu0 0.0
      %520 = vmatpush.msra.mxu0 0.0
      %521 = vmatpush.msra.mxu0 0.0
      %522 = vmatpush.msra.mxu0 0.0
      %523 = vmatpush.msra.mxu0 0.0
      %524 = vmatpush.msra.mxu0 %v505
      %525 = vmatpush.msra.mxu0 %v503
      %526 = vmatpush.msra.mxu0 %v501
      %527 = vmatpush.msra.mxu0 %v499
      %528 = vmatpush.msra.mxu0 %v497
      %529 = vmatpush.msra.mxu0 %v495
      %530 = vmatpush.msra.mxu0 %v493
      %531 = vmatpush.msra.mxu0 %v491
      %532 = vmatpush.msra.mxu0 %v489
      %533 = vmatmul.f32.gmra.mxu0 %v515
      %v534 = vpop.f32.mrf.mxu0
      %v535 = vadd.f32 %v511, %v534
      %536 = vdwg.mxu0
      %537 = vmatpush.msra.mxu0 0.0
      %538 = vmatpush.msra.mxu0 0.0
      %539 = vmatpush.msra.mxu0 0.0
      %540 = vmatpush.msra.mxu0 0.0
      %541 = vmatpush.msra.mxu0 0.0
      %542 = vmatpush.msra.mxu0 0.0
      %543 = vmatpush.msra.mxu0 0.0
      %544 = vmatpush.msra.mxu0 %v506
      %545 = vmatpush.msra.mxu0 %v504
      %546 = vmatpush.msra.mxu0 %v502
      %547 = vmatpush.msra.mxu0 %v500
      %548 = vmatpush.msra.mxu0 %v498
      %549 = vmatpush.msra.mxu0 %v496
      %550 = vmatpush.msra.mxu0 %v494
      %551 = vmatpush.msra.mxu0 %v492
      %552 = vmatpush.msra.mxu0 %v490
      %553 = vmatmul.f32.gmra.mxu0 %v515
      %v554 = vpop.f32.mrf.mxu0
      %v555 = vadd.f32 %v511, %v554
      %556 = vdwg.mxu0
      %v557 = vmax.f32 %v535, 0.0
      %v558 = vmax.f32 %v555, 0.0
      %559 = vrot.lane.b32.xlu0 %v557, 17
      %v560 = vpop.permute.xlu0 %559
      %561 = vrot.lane.b32.xlu0 %v558, 17
      %v562 = vpop.permute.xlu0 %561
      %v563 = vsel %vm347, %v560, %v562
      %v564 = vsel %vm347, %v562, %v560
      %v565 = vld [vmem:[%s7] sm:$0x3]
      %v567 = vperm.slane %v565, 0
      %v568 = vperm.slane %v565, 1
      %v571 = vmul.f32 %v564, %v567
      %v572 = vmul.f32 %v563, %v568
      %573 = vst [vmem:[#allocation2] sm:$0xff] %v571
      %574 = vst [vmem:[#allocation2 + $0x8] sm:$0xff] %v572
      %575 = vrot.lane.b32.xlu0 %v557, 16
      %v576 = vpop.permute.xlu0 %575
      %577 = vrot.lane.b32.xlu0 %v558, 16
      %v578 = vpop.permute.xlu0 %577
      %v579 = vsel %vm364, %v576, %v578
      %v580 = vsel %vm364, %v578, %v576
      %v581 = vld [vmem:[%s367] sm:$0x3]
      %v583 = vperm.slane %v581, 0
      %v584 = vperm.slane %v581, 1
      %v587 = vmul.f32 %v580, %v583
      %v588 = vmul.f32 %v579, %v584
      %589 = vst [vmem:[#allocation2 + $0x10] sm:$0xff] %v587
      %590 = vst [vmem:[#allocation2 + $0x18] sm:$0xff] %v588
      %591 = vrot.lane.b32.xlu0 %v557, 15
      %v592 = vpop.permute.xlu0 %591
      %593 = vrot.lane.b32.xlu0 %v558, 15
      %v594 = vpop.permute.xlu0 %593
      %v595 = vsel %vm382, %v592, %v594
      %v596 = vsel %vm382, %v594, %v592
      %v597 = vld [vmem:[%s385] sm:$0x3]
      %v599 = vperm.slane %v597, 0
      %v600 = vperm.slane %v597, 1
      %v603 = vmul.f32 %v596, %v599
      %v604 = vmul.f32 %v595, %v600
      %605 = vst [vmem:[#allocation2 + $0x20] sm:$0xff] %v603
      %606 = vst [vmem:[#allocation2 + $0x28] sm:$0xff] %v604
      %607 = vrot.lane.b32.xlu0 %v557, 1
      %v608 = vpop.permute.xlu0 %607
      %609 = vrot.lane.b32.xlu0 %v558, 1
      %v610 = vpop.permute.xlu0 %609
      %v611 = vsel %vm400, %v608, %v610
      %v612 = vsel %vm400, %v610, %v608
      %v613 = vld [vmem:[%s403] sm:$0x3]
      %v615 = vperm.slane %v613, 0
      %v616 = vperm.slane %v613, 1
      %v619 = vmul.f32 %v612, %v615
      %v620 = vmul.f32 %v611, %v616
      %621 = vst [vmem:[#allocation2 + $0x30] sm:$0xff] %v619
      %622 = vst [vmem:[#allocation2 + $0x38] sm:$0xff] %v620
      %623 = vst [vmem:[#allocation2 + $0x40] sm:$0xff] %v557
      %624 = vst [vmem:[#allocation2 + $0x48] sm:$0xff] %v558
      %625 = vrot.lane.b32.xlu0 %v557, 127
      %v626 = vpop.permute.xlu0 %625
      %627 = vrot.lane.b32.xlu0 %v558, 127
      %v628 = vpop.permute.xlu0 %627
      %v629 = vsel %vm420, %v626, %v628
      %v630 = vsel %vm420, %v628, %v626
      %v631 = vld [vmem:[%s423] sm:$0x3]
      %v633 = vperm.slane %v631, 0
      %v634 = vperm.slane %v631, 1
      %v637 = vmul.f32 %v629, %v633
      %v638 = vmul.f32 %v630, %v634
      %639 = vst [vmem:[#allocation2 + $0x50] sm:$0xff] %v637
      %640 = vst [vmem:[#allocation2 + $0x58] sm:$0xff] %v638
      %641 = vrot.lane.b32.xlu0 %v557, 113
      %v642 = vpop.permute.xlu0 %641
      %643 = vrot.lane.b32.xlu0 %v558, 113
      %v644 = vpop.permute.xlu0 %643
      %v645 = vsel %vm438, %v642, %v644
      %v646 = vsel %vm438, %v644, %v642
      %v647 = vld [vmem:[%s441] sm:$0x3]
      %v649 = vperm.slane %v647, 0
      %v650 = vperm.slane %v647, 1
      %v653 = vmul.f32 %v645, %v649
      %v654 = vmul.f32 %v646, %v650
      %655 = vst [vmem:[#allocation2 + $0x60] sm:$0xff] %v653
      %656 = vst [vmem:[#allocation2 + $0x68] sm:$0xff] %v654
      %657 = vrot.lane.b32.xlu0 %v557, 112
      %v658 = vpop.permute.xlu0 %657
      %659 = vrot.lane.b32.xlu0 %v558, 112
      %v660 = vpop.permute.xlu0 %659
      %v661 = vsel %vm456, %v658, %v660
      %v662 = vsel %vm456, %v660, %v658
      %v663 = vld [vmem:[%s459] sm:$0x3]
      %v665 = vperm.slane %v663, 0
      %v666 = vperm.slane %v663, 1
      %v669 = vmul.f32 %v661, %v665
      %v670 = vmul.f32 %v662, %v666
      %671 = vst [vmem:[#allocation2 + $0x70] sm:$0xff] %v669
      %672 = vst [vmem:[#allocation2 + $0x78] sm:$0xff] %v670
      %673 = vrot.lane.b32.xlu0 %v557, 111
      %v674 = vpop.permute.xlu0 %673
      %675 = vrot.lane.b32.xlu0 %v558, 111
      %v676 = vpop.permute.xlu0 %675
      %v677 = vsel %vm474, %v674, %v676
      %v678 = vsel %vm474, %v676, %v674
      %v679 = vld [vmem:[%s477] sm:$0x3]
      %v681 = vperm.slane %v679, 0
      %v682 = vperm.slane %v679, 1
      %v685 = vmul.f32 %v677, %v681
      %v686 = vmul.f32 %v678, %v682
      %687 = vst [vmem:[#allocation2 + $0x80] sm:$0xff] %v685
      %688 = vst [vmem:[#allocation2 + $0x88] sm:$0xff] %v686
      %v689 = vld [vmem:[%s2] sm:$0xff]
      %v690 = vld [vmem:[#allocation2] sm:$0xff]
      %v691 = vld [vmem:[#allocation2 + $0x8] sm:$0xff]
      %v692 = vld [vmem:[#allocation2 + $0x10] sm:$0xff]
      %v693 = vld [vmem:[#allocation2 + $0x18] sm:$0xff]
      %v694 = vld [vmem:[#allocation2 + $0x20] sm:$0xff]
      %v695 = vld [vmem:[#allocation2 + $0x28] sm:$0xff]
      %v696 = vld [vmem:[#allocation2 + $0x30] sm:$0xff]
      %v697 = vld [vmem:[#allocation2 + $0x38] sm:$0xff]
      %v698 = vld [vmem:[#allocation2 + $0x40] sm:$0xff]
      %v699 = vld [vmem:[#allocation2 + $0x48] sm:$0xff]
      %v700 = vld [vmem:[#allocation2 + $0x50] sm:$0xff]
      %v701 = vld [vmem:[#allocation2 + $0x58] sm:$0xff]
      %v702 = vld [vmem:[#allocation2 + $0x60] sm:$0xff]
      %v703 = vld [vmem:[#allocation2 + $0x68] sm:$0xff]
      %v704 = vld [vmem:[#allocation2 + $0x70] sm:$0xff]
      %v705 = vld [vmem:[#allocation2 + $0x78] sm:$0xff]
      %v706 = vld [vmem:[#allocation2 + $0x80] sm:$0xff]
      %v707 = vld [vmem:[#allocation2 + $0x88] sm:$0xff]
      %s708 = scalar_lea.vmem %s6, 8
      %v709 = vld [vmem:[%s708] sm:$0xff]
      %711 = vset.pattern.permute.xlu0 0
      %712 = vperm.xlu0 %711, %v709
      %v713 = vpop.permute.xlu0 %712
      %v716 = vsel %vm513, %v689, 0
      %718 = vmatpush.msra.mxu0 0.0
      %719 = vmatpush.msra.mxu0 0.0
      %720 = vmatpush.msra.mxu0 0.0
      %721 = vmatpush.msra.mxu0 0.0
      %722 = vmatpush.msra.mxu0 0.0
      %723 = vmatpush.msra.mxu0 0.0
      %724 = vmatpush.msra.mxu0 0.0
      %725 = vmatpush.msra.mxu0 %v706
      %726 = vmatpush.msra.mxu0 %v704
      %727 = vmatpush.msra.mxu0 %v702
      %728 = vmatpush.msra.mxu0 %v700
      %729 = vmatpush.msra.mxu0 %v698
      %730 = vmatpush.msra.mxu0 %v696
      %731 = vmatpush.msra.mxu0 %v694
      %732 = vmatpush.msra.mxu0 %v692
      %733 = vmatpush.msra.mxu0 %v690
      %734 = vmatmul.f32.gmra.mxu0 %v716
      %v735 = vpop.f32.mrf.mxu0
      %v736 = vadd.f32 %v713, %v735
      %737 = vdwg.mxu0
      %738 = vmatpush.msra.mxu0 0.0
      %739 = vmatpush.msra.mxu0 0.0
      %740 = vmatpush.msra.mxu0 0.0
      %741 = vmatpush.msra.mxu0 0.0
      %742 = vmatpush.msra.mxu0 0.0
      %743 = vmatpush.msra.mxu0 0.0
      %744 = vmatpush.msra.mxu0 0.0
      %745 = vmatpush.msra.mxu0 %v707
      %746 = vmatpush.msra.mxu0 %v705
      %747 = vmatpush.msra.mxu0 %v703
      %748 = vmatpush.msra.mxu0 %v701
      %749 = vmatpush.msra.mxu0 %v699
      %750 = vmatpush.msra.mxu0 %v697
      %751 = vmatpush.msra.mxu0 %v695
      %752 = vmatpush.msra.mxu0 %v693
      %753 = vmatpush.msra.mxu0 %v691
      %754 = vmatmul.f32.gmra.mxu0 %v716
      %v755 = vpop.f32.mrf.mxu0
      %v756 = vadd.f32 %v713, %v755
      %757 = vdwg.mxu0
      %v758 = vmax.f32 %v736, 0.0
      %v759 = vmax.f32 %v756, 0.0
      %760 = vrot.lane.b32.xlu0 %v758, 17
      %v761 = vpop.permute.xlu0 %760
      %762 = vrot.lane.b32.xlu0 %v759, 17
      %v763 = vpop.permute.xlu0 %762
      %v764 = vsel %vm347, %v761, %v763
      %v765 = vsel %vm347, %v763, %v761
      %v766 = vld [vmem:[%s7] sm:$0x3]
      %v768 = vperm.slane %v766, 0
      %v769 = vperm.slane %v766, 1
      %v772 = vmul.f32 %v765, %v768
      %v773 = vmul.f32 %v764, %v769
      %774 = vst [vmem:[#allocation2 + $0x90] sm:$0xff] %v772
      %775 = vst [vmem:[#allocation2 + $0x98] sm:$0xff] %v773
      %776 = vrot.lane.b32.xlu0 %v758, 16
      %v777 = vpop.permute.xlu0 %776
      %778 = vrot.lane.b32.xlu0 %v759, 16
      %v779 = vpop.permute.xlu0 %778
      %v780 = vsel %vm364, %v777, %v779
      %v781 = vsel %vm364, %v779, %v777
      %v782 = vld [vmem:[%s367] sm:$0x3]
      %v784 = vperm.slane %v782, 0
      %v785 = vperm.slane %v782, 1
      %v788 = vmul.f32 %v781, %v784
      %v789 = vmul.f32 %v780, %v785
      %790 = vst [vmem:[#allocation2 + $0xa0] sm:$0xff] %v788
      %791 = vst [vmem:[#allocation2 + $0xa8] sm:$0xff] %v789
      %792 = vrot.lane.b32.xlu0 %v758, 15
      %v793 = vpop.permute.xlu0 %792
      %794 = vrot.lane.b32.xlu0 %v759, 15
      %v795 = vpop.permute.xlu0 %794
      %v796 = vsel %vm382, %v793, %v795
      %v797 = vsel %vm382, %v795, %v793
      %v798 = vld [vmem:[%s385] sm:$0x3]
      %v800 = vperm.slane %v798, 0
      %v801 = vperm.slane %v798, 1
      %v804 = vmul.f32 %v797, %v800
      %v805 = vmul.f32 %v796, %v801
      %806 = vst [vmem:[#allocation2 + $0xb0] sm:$0xff] %v804
      %807 = vst [vmem:[#allocation2 + $0xb8] sm:$0xff] %v805
      %808 = vrot.lane.b32.xlu0 %v758, 1
      %v809 = vpop.permute.xlu0 %808
      %810 = vrot.lane.b32.xlu0 %v759, 1
      %v811 = vpop.permute.xlu0 %810
      %v812 = vsel %vm400, %v809, %v811
      %v813 = vsel %vm400, %v811, %v809
      %v814 = vld [vmem:[%s403] sm:$0x3]
      %v816 = vperm.slane %v814, 0
      %v817 = vperm.slane %v814, 1
      %v820 = vmul.f32 %v813, %v816
      %v821 = vmul.f32 %v812, %v817
      %822 = vst [vmem:[#allocation2 + $0xc0] sm:$0xff] %v820
      %823 = vst [vmem:[#allocation2 + $0xc8] sm:$0xff] %v821
      %824 = vst [vmem:[#allocation2 + $0xd0] sm:$0xff] %v758
      %825 = vst [vmem:[#allocation2 + $0xd8] sm:$0xff] %v759
      %826 = vrot.lane.b32.xlu0 %v758, 127
      %v827 = vpop.permute.xlu0 %826
      %828 = vrot.lane.b32.xlu0 %v759, 127
      %v829 = vpop.permute.xlu0 %828
      %v830 = vsel %vm420, %v827, %v829
      %v831 = vsel %vm420, %v829, %v827
      %v832 = vld [vmem:[%s423] sm:$0x3]
      %v834 = vperm.slane %v832, 0
      %v835 = vperm.slane %v832, 1
      %v838 = vmul.f32 %v830, %v834
      %v839 = vmul.f32 %v831, %v835
      %840 = vst [vmem:[#allocation2 + $0xe0] sm:$0xff] %v838
      %841 = vst [vmem:[#allocation2 + $0xe8] sm:$0xff] %v839
      %842 = vrot.lane.b32.xlu0 %v758, 113
      %v843 = vpop.permute.xlu0 %842
      %844 = vrot.lane.b32.xlu0 %v759, 113
      %v845 = vpop.permute.xlu0 %844
      %v846 = vsel %vm438, %v843, %v845
      %v847 = vsel %vm438, %v845, %v843
      %v848 = vld [vmem:[%s441] sm:$0x3]
      %v850 = vperm.slane %v848, 0
      %v851 = vperm.slane %v848, 1
      %v854 = vmul.f32 %v846, %v850
      %v855 = vmul.f32 %v847, %v851
      %856 = vst [vmem:[#allocation2 + $0xf0] sm:$0xff] %v854
      %857 = vst [vmem:[#allocation2 + $0xf8] sm:$0xff] %v855
      %858 = vrot.lane.b32.xlu0 %v758, 112
      %v859 = vpop.permute.xlu0 %858
      %860 = vrot.lane.b32.xlu0 %v759, 112
      %v861 = vpop.permute.xlu0 %860
      %v862 = vsel %vm456, %v859, %v861
      %v863 = vsel %vm456, %v861, %v859
      %v864 = vld [vmem:[%s459] sm:$0x3]
      %v866 = vperm.slane %v864, 0
      %v867 = vperm.slane %v864, 1
      %v870 = vmul.f32 %v862, %v866
      %v871 = vmul.f32 %v863, %v867
      %872 = vst [vmem:[#allocation2 + $0x100] sm:$0xff] %v870
      %873 = vst [vmem:[#allocation2 + $0x108] sm:$0xff] %v871
      %874 = vrot.lane.b32.xlu0 %v758, 111
      %v875 = vpop.permute.xlu0 %874
      %876 = vrot.lane.b32.xlu0 %v759, 111
      %v877 = vpop.permute.xlu0 %876
      %v878 = vsel %vm474, %v875, %v877
      %v879 = vsel %vm474, %v877, %v875
      %v880 = vld [vmem:[%s477] sm:$0x3]
      %v882 = vperm.slane %v880, 0
      %v883 = vperm.slane %v880, 1
      %v886 = vmul.f32 %v878, %v882
      %v887 = vmul.f32 %v879, %v883
      %888 = vst [vmem:[#allocation2 + $0x110] sm:$0xff] %v886
      %889 = vst [vmem:[#allocation2 + $0x118] sm:$0xff] %v887
      %v890 = vld [vmem:[%s3] sm:$0xff]
      %v891 = vld [vmem:[%s3 + $0x8] sm:$0xff]
      %v892 = vld [vmem:[#allocation2] sm:$0xff]
      %v893 = vld [vmem:[#allocation2 + $0x8] sm:$0xff]
      %v894 = vld [vmem:[#allocation2 + $0x10] sm:$0xff]
      %v895 = vld [vmem:[#allocation2 + $0x18] sm:$0xff]
      %v896 = vld [vmem:[#allocation2 + $0x20] sm:$0xff]
      %v897 = vld [vmem:[#allocation2 + $0x28] sm:$0xff]
      %v898 = vld [vmem:[#allocation2 + $0x30] sm:$0xff]
      %v899 = vld [vmem:[#allocation2 + $0x38] sm:$0xff]
      %v900 = vld [vmem:[#allocation2 + $0x40] sm:$0xff]
      %v901 = vld [vmem:[#allocation2 + $0x48] sm:$0xff]
      %v902 = vld [vmem:[#allocation2 + $0x50] sm:$0xff]
      %v903 = vld [vmem:[#allocation2 + $0x58] sm:$0xff]
      %v904 = vld [vmem:[#allocation2 + $0x60] sm:$0xff]
      %v905 = vld [vmem:[#allocation2 + $0x68] sm:$0xff]
      %v906 = vld [vmem:[#allocation2 + $0x70] sm:$0xff]
      %v907 = vld [vmem:[#allocation2 + $0x78] sm:$0xff]
      %v908 = vld [vmem:[#allocation2 + $0x80] sm:$0xff]
      %v909 = vld [vmem:[#allocation2 + $0x88] sm:$0xff]
      %v910 = vld [vmem:[#allocation2 + $0x90] sm:$0xff]
      %v911 = vld [vmem:[#allocation2 + $0x98] sm:$0xff]
      %v912 = vld [vmem:[#allocation2 + $0xa0] sm:$0xff]
      %v913 = vld [vmem:[#allocation2 + $0xa8] sm:$0xff]
      %v914 = vld [vmem:[#allocation2 + $0xb0] sm:$0xff]
      %v915 = vld [vmem:[#allocation2 + $0xb8] sm:$0xff]
      %v916 = vld [vmem:[#allocation2 + $0xc0] sm:$0xff]
      %v917 = vld [vmem:[#allocation2 + $0xc8] sm:$0xff]
      %v918 = vld [vmem:[#allocation2 + $0xd0] sm:$0xff]
      %v919 = vld [vmem:[#allocation2 + $0xd8] sm:$0xff]
      %v920 = vld [vmem:[#allocation2 + $0xe0] sm:$0xff]
      %v921 = vld [vmem:[#allocation2 + $0xe8] sm:$0xff]
      %v922 = vld [vmem:[#allocation2 + $0xf0] sm:$0xff]
      %v923 = vld [vmem:[#allocation2 + $0xf8] sm:$0xff]
      %v924 = vld [vmem:[#allocation2 + $0x100] sm:$0xff]
      %v925 = vld [vmem:[#allocation2 + $0x108] sm:$0xff]
      %v926 = vld [vmem:[#allocation2 + $0x110] sm:$0xff]
      %v927 = vld [vmem:[#allocation2 + $0x118] sm:$0xff]
      %s928 = scalar_lea.vmem %s6, 16
      %v929 = vld [vmem:[%s928] sm:$0xff]
      %931 = vset.pattern.permute.xlu0 0
      %932 = vperm.xlu0 %931, %v929
      %v933 = vpop.permute.xlu0 %932
      %vm935 = vcmask 130048
      %v937 = vsel %vm935, %v891, 0
      %939 = vmatpush.msra.mxu0 %v922
      %940 = vmatpush.msra.mxu0 %v920
      %941 = vmatpush.msra.mxu0 %v918
      %942 = vmatpush.msra.mxu0 %v916
      %943 = vmatpush.msra.mxu0 %v914
      %944 = vmatpush.msra.mxu0 %v912
      %945 = vmatpush.msra.mxu0 %v910
      %946 = vmatpush.msra.mxu0 %v908
      %947 = vmatpush.msra.mxu0 %v906
      %948 = vmatpush.msra.mxu0 %v904
      %949 = vmatpush.msra.mxu0 %v902
      %950 = vmatpush.msra.mxu0 %v900
      %951 = vmatpush.msra.mxu0 %v898
      %952 = vmatpush.msra.mxu0 %v896
      %953 = vmatpush.msra.mxu0 %v894
      %954 = vmatpush.msra.mxu0 %v892
      %955 = vmatmul.f32.gmra.mxu0 %v890
      %v956 = vpop.f32.mrf.mxu0
      %v957 = vadd.f32 %v933, %v956
      %958 = vdwg.mxu0
      %959 = vmatpush.msra.mxu0 0.0
      %960 = vmatpush.msra.mxu0 0.0
      %961 = vmatpush.msra.mxu0 0.0
      %962 = vmatpush.msra.mxu0 0.0
      %963 = vmatpush.msra.mxu0 0.0
      %964 = vmatpush.msra.mxu0 0.0
      %965 = vmatpush.msra.mxu0 0.0
      %966 = vmatpush.msra.mxu0 0.0
      %967 = vmatpush.msra.mxu0 0.0
      %968 = vmatpush.msra.mxu0 0.0
      %969 = vmatpush.msra.mxu0 0.0
      %970 = vmatpush.msra.mxu0 0.0
      %971 = vmatpush.msra.mxu0 0.0
      %972 = vmatpush.msra.mxu0 0.0
      %973 = vmatpush.msra.mxu0 %v926
      %974 = vmatpush.msra.mxu0 %v924
      %975 = vmatmul.f32.gmra.mxu0 %v937
      %v976 = vpop.f32.mrf.mxu0
      %v977 = vadd.f32 %v957, %v976
      %978 = vdwg.mxu0
      %979 = vmatpush.msra.mxu0 %v923
      %980 = vmatpush.msra.mxu0 %v921
      %981 = vmatpush.msra.mxu0 %v919
      %982 = vmatpush.msra.mxu0 %v917
      %983 = vmatpush.msra.mxu0 %v915
      %984 = vmatpush.msra.mxu0 %v913
      %985 = vmatpush.msra.mxu0 %v911
      %986 = vmatpush.msra.mxu0 %v909
      %987 = vmatpush.msra.mxu0 %v907
      %988 = vmatpush.msra.mxu0 %v905
      %989 = vmatpush.msra.mxu0 %v903
      %990 = vmatpush.msra.mxu0 %v901
      %991 = vmatpush.msra.mxu0 %v899
      %992 = vmatpush.msra.mxu0 %v897
      %993 = vmatpush.msra.mxu0 %v895
      %994 = vmatpush.msra.mxu0 %v893
      %995 = vmatmul.f32.gmra.mxu0 %v890
      %v996 = vpop.f32.mrf.mxu0
      %v997 = vadd.f32 %v933, %v996
      %998 = vdwg.mxu0
      %999 = vmatpush.msra.mxu0 0.0
      %1000 = vmatpush.msra.mxu0 0.0
      %1001 = vmatpush.msra.mxu0 0.0
      %1002 = vmatpush.msra.mxu0 0.0
      %1003 = vmatpush.msra.mxu0 0.0
      %1004 = vmatpush.msra.mxu0 0.0
      %1005 = vmatpush.msra.mxu0 0.0
      %1006 = vmatpush.msra.mxu0 0.0
      %1007 = vmatpush.msra.mxu0 0.0
      %1008 = vmatpush.msra.mxu0 0.0
      %1009 = vmatpush.msra.mxu0 0.0
      %1010 = vmatpush.msra.mxu0 0.0
      %1011 = vmatpush.msra.mxu0 0.0
      %1012 = vmatpush.msra.mxu0 0.0
      %1013 = vmatpush.msra.mxu0 %v927
      %1014 = vmatpush.msra.mxu0 %v925
      %1015 = vmatmul.f32.gmra.mxu0 %v937
      %v1016 = vpop.f32.mrf.mxu0
      %v1017 = vadd.f32 %v997, %v1016
      %1018 = vdwg.mxu0
      %v1019 = vmax.f32 %v977, 0.0
      %v1020 = vmax.f32 %v1017, 0.0
      %1021 = vrot.lane.b32.xlu0 %v1019, 17
      %v1022 = vpop.permute.xlu0 %1021
      %1023 = vrot.lane.b32.xlu0 %v1020, 17
      %v1024 = vpop.permute.xlu0 %1023
      %v1025 = vsel %vm347, %v1022, %v1024
      %v1026 = vsel %vm347, %v1024, %v1022
      %v1027 = vld [vmem:[%s7] sm:$0x3]
      %v1029 = vperm.slane %v1027, 0
      %v1030 = vperm.slane %v1027, 1
      %v1033 = vmul.f32 %v1026, %v1029
      %v1034 = vmul.f32 %v1025, %v1030
      %1035 = vst [vmem:[#allocation2 + $0x120] sm:$0xff] %v1033
      %1036 = vst [vmem:[#allocation2 + $0x128] sm:$0xff] %v1034
      %1037 = vrot.lane.b32.xlu0 %v1019, 16
      %v1038 = vpop.permute.xlu0 %1037
      %1039 = vrot.lane.b32.xlu0 %v1020, 16
      %v1040 = vpop.permute.xlu0 %1039
      %v1041 = vsel %vm364, %v1038, %v1040
      %v1042 = vsel %vm364, %v1040, %v1038
      %v1043 = vld [vmem:[%s367] sm:$0x3]
      %v1045 = vperm.slane %v1043, 0
      %v1046 = vperm.slane %v1043, 1
      %v1049 = vmul.f32 %v1042, %v1045
      %v1050 = vmul.f32 %v1041, %v1046
      %1051 = vst [vmem:[#allocation2 + $0x130] sm:$0xff] %v1049
      %1052 = vst [vmem:[#allocation2 + $0x138] sm:$0xff] %v1050
      %1053 = vrot.lane.b32.xlu0 %v1019, 15
      %v1054 = vpop.permute.xlu0 %1053
      %1055 = vrot.lane.b32.xlu0 %v1020, 15
      %v1056 = vpop.permute.xlu0 %1055
      %v1057 = vsel %vm382, %v1054, %v1056
      %v1058 = vsel %vm382, %v1056, %v1054
      %v1059 = vld [vmem:[%s385] sm:$0x3]
      %v1061 = vperm.slane %v1059, 0
      %v1062 = vperm.slane %v1059, 1
      %v1065 = vmul.f32 %v1058, %v1061
      %v1066 = vmul.f32 %v1057, %v1062
      %1067 = vst [vmem:[#allocation2 + $0x140] sm:$0xff] %v1065
      %1068 = vst [vmem:[#allocation2 + $0x148] sm:$0xff] %v1066
      %1069 = vrot.lane.b32.xlu0 %v1019, 1
      %v1070 = vpop.permute.xlu0 %1069
      %1071 = vrot.lane.b32.xlu0 %v1020, 1
      %v1072 = vpop.permute.xlu0 %1071
      %v1073 = vsel %vm400, %v1070, %v1072
      %v1074 = vsel %vm400, %v1072, %v1070
      %v1075 = vld [vmem:[%s403] sm:$0x3]
      %v1077 = vperm.slane %v1075, 0
      %v1078 = vperm.slane %v1075, 1
      %v1081 = vmul.f32 %v1074, %v1077
      %v1082 = vmul.f32 %v1073, %v1078
      %1083 = vst [vmem:[#allocation2 + $0x150] sm:$0xff] %v1081
      %1084 = vst [vmem:[#allocation2 + $0x158] sm:$0xff] %v1082
      %1085 = vst [vmem:[#allocation2 + $0x160] sm:$0xff] %v1019
      %1086 = vst [vmem:[#allocation2 + $0x168] sm:$0xff] %v1020
      %1087 = vrot.lane.b32.xlu0 %v1019, 127
      %v1088 = vpop.permute.xlu0 %1087
      %1089 = vrot.lane.b32.xlu0 %v1020, 127
      %v1090 = vpop.permute.xlu0 %1089
      %v1091 = vsel %vm420, %v1088, %v1090
      %v1092 = vsel %vm420, %v1090, %v1088
      %v1093 = vld [vmem:[%s423] sm:$0x3]
      %v1095 = vperm.slane %v1093, 0
      %v1096 = vperm.slane %v1093, 1
      %v1099 = vmul.f32 %v1091, %v1095
      %v1100 = vmul.f32 %v1092, %v1096
      %1101 = vst [vmem:[#allocation2 + $0x170] sm:$0xff] %v1099
      %1102 = vst [vmem:[#allocation2 + $0x178] sm:$0xff] %v1100
      %1103 = vrot.lane.b32.xlu0 %v1019, 113
      %v1104 = vpop.permute.xlu0 %1103
      %1105 = vrot.lane.b32.xlu0 %v1020, 113
      %v1106 = vpop.permute.xlu0 %1105
      %v1107 = vsel %vm438, %v1104, %v1106
      %v1108 = vsel %vm438, %v1106, %v1104
      %v1109 = vld [vmem:[%s441] sm:$0x3]
      %v1111 = vperm.slane %v1109, 0
      %v1112 = vperm.slane %v1109, 1
      %v1115 = vmul.f32 %v1107, %v1111
      %v1116 = vmul.f32 %v1108, %v1112
      %1117 = vst [vmem:[#allocation2 + $0x180] sm:$0xff] %v1115
      %1118 = vst [vmem:[#allocation2 + $0x188] sm:$0xff] %v1116
      %1119 = vrot.lane.b32.xlu0 %v1019, 112
      %v1120 = vpop.permute.xlu0 %1119
      %1121 = vrot.lane.b32.xlu0 %v1020, 112
      %v1122 = vpop.permute.xlu0 %1121
      %v1123 = vsel %vm456, %v1120, %v1122
      %v1124 = vsel %vm456, %v1122, %v1120
      %v1125 = vld [vmem:[%s459] sm:$0x3]
      %v1127 = vperm.slane %v1125, 0
      %v1128 = vperm.slane %v1125, 1
      %v1131 = vmul.f32 %v1123, %v1127
      %v1132 = vmul.f32 %v1124, %v1128
      %1133 = vst [vmem:[#allocation2 + $0x190] sm:$0xff] %v1131
      %1134 = vst [vmem:[#allocation2 + $0x198] sm:$0xff] %v1132
      %1135 = vrot.lane.b32.xlu0 %v1019, 111
      %v1136 = vpop.permute.xlu0 %1135
      %1137 = vrot.lane.b32.xlu0 %v1020, 111
      %v1138 = vpop.permute.xlu0 %1137
      %v1139 = vsel %vm474, %v1136, %v1138
      %v1140 = vsel %vm474, %v1138, %v1136
      %v1141 = vld [vmem:[%s477] sm:$0x3]
      %v1143 = vperm.slane %v1141, 0
      %v1144 = vperm.slane %v1141, 1
      %v1147 = vmul.f32 %v1139, %v1143
      %v1148 = vmul.f32 %v1140, %v1144
      %1149 = vst [vmem:[#allocation2 + $0x1a0] sm:$0xff] %v1147
      %1150 = vst [vmem:[#allocation2 + $0x1a8] sm:$0xff] %v1148
      %v1151 = vld [vmem:[%s4] sm:$0xff]
      %v1152 = vld [vmem:[%s4 + $0x8] sm:$0xff]
      %v1153 = vld [vmem:[#allocation2] sm:$0xff]
      %v1154 = vld [vmem:[#allocation2 + $0x8] sm:$0xff]
      %v1155 = vld [vmem:[#allocation2 + $0x10] sm:$0xff]
      %v1156 = vld [vmem:[#allocation2 + $0x18] sm:$0xff]
      %v1157 = vld [vmem:[#allocation2 + $0x20] sm:$0xff]
      %v1158 = vld [vmem:[#allocation2 + $0x28] sm:$0xff]
      %v1159 = vld [vmem:[#allocation2 + $0x30] sm:$0xff]
      %v1160 = vld [vmem:[#allocation2 + $0x38] sm:$0xff]
      %v1161 = vld [vmem:[#allocation2 + $0x40] sm:$0xff]
      %v1162 = vld [vmem:[#allocation2 + $0x48] sm:$0xff]
      %v1163 = vld [vmem:[#allocation2 + $0x50] sm:$0xff]
      %v1164 = vld [vmem:[#allocation2 + $0x58] sm:$0xff]
      %v1165 = vld [vmem:[#allocation2 + $0x60] sm:$0xff]
      %v1166 = vld [vmem:[#allocation2 + $0x68] sm:$0xff]
      %v1167 = vld [vmem:[#allocation2 + $0x70] sm:$0xff]
      %v1168 = vld [vmem:[#allocation2 + $0x78] sm:$0xff]
      %v1169 = vld [vmem:[#allocation2 + $0x80] sm:$0xff]
      %v1170 = vld [vmem:[#allocation2 + $0x88] sm:$0xff]
      %v1171 = vld [vmem:[#allocation2 + $0x90] sm:$0xff]
      %v1172 = vld [vmem:[#allocation2 + $0x98] sm:$0xff]
      %v1173 = vld [vmem:[#allocation2 + $0xa0] sm:$0xff]
      %v1174 = vld [vmem:[#allocation2 + $0xa8] sm:$0xff]
      %v1175 = vld [vmem:[#allocation2 + $0xb0] sm:$0xff]
      %v1176 = vld [vmem:[#allocation2 + $0xb8] sm:$0xff]
      %v1177 = vld [vmem:[#allocation2 + $0xc0] sm:$0xff]
      %v1178 = vld [vmem:[#allocation2 + $0xc8] sm:$0xff]
      %v1179 = vld [vmem:[#allocation2 + $0xd0] sm:$0xff]
      %v1180 = vld [vmem:[#allocation2 + $0xd8] sm:$0xff]
      %v1181 = vld [vmem:[#allocation2 + $0xe0] sm:$0xff]
      %v1182 = vld [vmem:[#allocation2 + $0xe8] sm:$0xff]
      %v1183 = vld [vmem:[#allocation2 + $0xf0] sm:$0xff]
      %v1184 = vld [vmem:[#allocation2 + $0xf8] sm:$0xff]
      %v1185 = vld [vmem:[#allocation2 + $0x100] sm:$0xff]
      %v1186 = vld [vmem:[#allocation2 + $0x108] sm:$0xff]
      %v1187 = vld [vmem:[#allocation2 + $0x110] sm:$0xff]
      %v1188 = vld [vmem:[#allocation2 + $0x118] sm:$0xff]
      %v1189 = vld [vmem:[#allocation2 + $0x120] sm:$0xff]
      %v1190 = vld [vmem:[#allocation2 + $0x128] sm:$0xff]
      %v1191 = vld [vmem:[#allocation2 + $0x130] sm:$0xff]
      %v1192 = vld [vmem:[#allocation2 + $0x138] sm:$0xff]
      %v1193 = vld [vmem:[#allocation2 + $0x140] sm:$0xff]
      %v1194 = vld [vmem:[#allocation2 + $0x148] sm:$0xff]
      %v1195 = vld [vmem:[#allocation2 + $0x150] sm:$0xff]
      %v1196 = vld [vmem:[#allocation2 + $0x158] sm:$0xff]
      %v1197 = vld [vmem:[#allocation2 + $0x160] sm:$0xff]
      %v1198 = vld [vmem:[#allocation2 + $0x168] sm:$0xff]
      %v1199 = vld [vmem:[#allocation2 + $0x170] sm:$0xff]
      %v1200 = vld [vmem:[#allocation2 + $0x178] sm:$0xff]
      %v1201 = vld [vmem:[#allocation2 + $0x180] sm:$0xff]
      %v1202 = vld [vmem:[#allocation2 + $0x188] sm:$0xff]
      %v1203 = vld [vmem:[#allocation2 + $0x190] sm:$0xff]
      %v1204 = vld [vmem:[#allocation2 + $0x198] sm:$0xff]
      %v1205 = vld [vmem:[#allocation2 + $0x1a0] sm:$0xff]
      %v1206 = vld [vmem:[#allocation2 + $0x1a8] sm:$0xff]
      %s1207 = scalar_lea.vmem %s6, 24
      %v1208 = vld [vmem:[%s1207] sm:$0xff]
      %1210 = vset.pattern.permute.xlu0 0
      %1211 = vperm.xlu0 %1210, %v1208
      %v1212 = vpop.permute.xlu0 %1211
      %vm1214 = vcmask 719872
      %v1216 = vsel %vm1214, %v1152, 0
      %1218 = vmatpush.msra.mxu0 %v1183
      %1219 = vmatpush.msra.mxu0 %v1181
      %1220 = vmatpush.msra.mxu0 %v1179
      %1221 = vmatpush.msra.mxu0 %v1177
      %1222 = vmatpush.msra.mxu0 %v1175
      %1223 = vmatpush.msra.mxu0 %v1173
      %1224 = vmatpush.msra.mxu0 %v1171
      %1225 = vmatpush.msra.mxu0 %v1169
      %1226 = vmatpush.msra.mxu0 %v1167
      %1227 = vmatpush.msra.mxu0 %v1165
      %1228 = vmatpush.msra.mxu0 %v1163
      %1229 = vmatpush.msra.mxu0 %v1161
      %1230 = vmatpush.msra.mxu0 %v1159
      %1231 = vmatpush.msra.mxu0 %v1157
      %1232 = vmatpush.msra.mxu0 %v1155
      %1233 = vmatpush.msra.mxu0 %v1153
      %1234 = vmatmul.f32.gmra.mxu0 %v1151
      %v1235 = vpop.f32.mrf.mxu0
      %v1236 = vadd.f32 %v1212, %v1235
      %1237 = vdwg.mxu0
      %1238 = vmatpush.msra.mxu0 0.0
      %1239 = vmatpush.msra.mxu0 0.0
      %1240 = vmatpush.msra.mxu0 0.0
      %1241 = vmatpush.msra.mxu0 0.0
      %1242 = vmatpush.msra.mxu0 0.0
      %1243 = vmatpush.msra.mxu0 %v1205
      %1244 = vmatpush.msra.mxu0 %v1203
      %1245 = vmatpush.msra.mxu0 %v1201
      %1246 = vmatpush.msra.mxu0 %v1199
      %1247 = vmatpush.msra.mxu0 %v1197
      %1248 = vmatpush.msra.mxu0 %v1195
      %1249 = vmatpush.msra.mxu0 %v1193
      %1250 = vmatpush.msra.mxu0 %v1191
      %1251 = vmatpush.msra.mxu0 %v1189
      %1252 = vmatpush.msra.mxu0 %v1187
      %1253 = vmatpush.msra.mxu0 %v1185
      %1254 = vmatmul.f32.gmra.mxu0 %v1216
      %v1255 = vpop.f32.mrf.mxu0
      %v1256 = vadd.f32 %v1236, %v1255
      %1257 = vdwg.mxu0
      %1258 = vmatpush.msra.mxu0 %v1184
      %1259 = vmatpush.msra.mxu0 %v1182
      %1260 = vmatpush.msra.mxu0 %v1180
      %1261 = vmatpush.msra.mxu0 %v1178
      %1262 = vmatpush.msra.mxu0 %v1176
      %1263 = vmatpush.msra.mxu0 %v1174
      %1264 = vmatpush.msra.mxu0 %v1172
      %1265 = vmatpush.msra.mxu0 %v1170
      %1266 = vmatpush.msra.mxu0 %v1168
      %1267 = vmatpush.msra.mxu0 %v1166
      %1268 = vmatpush.msra.mxu0 %v1164
      %1269 = vmatpush.msra.mxu0 %v1162
      %1270 = vmatpush.msra.mxu0 %v1160
      %1271 = vmatpush.msra.mxu0 %v1158
      %1272 = vmatpush.msra.mxu0 %v1156
      %1273 = vmatpush.msra.mxu0 %v1154
      %1274 = vmatmul.f32.gmra.mxu0 %v1151
      %v1275 = vpop.f32.mrf.mxu0
      %v1276 = vadd.f32 %v1212, %v1275
      %1277 = vdwg.mxu0
      %1278 = vmatpush.msra.mxu0 0.0
      %1279 = vmatpush.msra.mxu0 0.0
      %1280 = vmatpush.msra.mxu0 0.0
      %1281 = vmatpush.msra.mxu0 0.0
      %1282 = vmatpush.msra.mxu0 0.0
      %1283 = vmatpush.msra.mxu0 %v1206
      %1284 = vmatpush.msra.mxu0 %v1204
      %1285 = vmatpush.msra.mxu0 %v1202
      %1286 = vmatpush.msra.mxu0 %v1200
      %1287 = vmatpush.msra.mxu0 %v1198
      %1288 = vmatpush.msra.mxu0 %v1196
      %1289 = vmatpush.msra.mxu0 %v1194
      %1290 = vmatpush.msra.mxu0 %v1192
      %1291 = vmatpush.msra.mxu0 %v1190
      %1292 = vmatpush.msra.mxu0 %v1188
      %1293 = vmatpush.msra.mxu0 %v1186
      %1294 = vmatmul.f32.gmra.mxu0 %v1216
      %v1295 = vpop.f32.mrf.mxu0
      %v1296 = vadd.f32 %v1276, %v1295
      %1297 = vdwg.mxu0
      %v1298 = vmax.f32 %v1256, 0.0
      %v1299 = vmax.f32 %v1296, 0.0
      %1300 = vrot.lane.b32.xlu0 %v1298, 17
      %v1301 = vpop.permute.xlu0 %1300
      %1302 = vrot.lane.b32.xlu0 %v1299, 17
      %v1303 = vpop.permute.xlu0 %1302
      %v1304 = vsel %vm347, %v1301, %v1303
      %v1305 = vsel %vm347, %v1303, %v1301
      %v1306 = vld [vmem:[%s7] sm:$0x3]
      %v1308 = vperm.slane %v1306, 0
      %v1309 = vperm.slane %v1306, 1
      %v1312 = vmul.f32 %v1305, %v1308
      %v1313 = vmul.f32 %v1304, %v1309
      %1314 = vst [vmem:[#allocation2 + $0x1b0] sm:$0xff] %v1312
      %1315 = vst [vmem:[#allocation2 + $0x1b8] sm:$0xff] %v1313
      %1316 = vrot.lane.b32.xlu0 %v1298, 16
      %v1317 = vpop.permute.xlu0 %1316
      %1318 = vrot.lane.b32.xlu0 %v1299, 16
      %v1319 = vpop.permute.xlu0 %1318
      %v1320 = vsel %vm364, %v1317, %v1319
      %v1321 = vsel %vm364, %v1319, %v1317
      %v1322 = vld [vmem:[%s367] sm:$0x3]
      %v1324 = vperm.slane %v1322, 0
      %v1325 = vperm.slane %v1322, 1
      %v1328 = vmul.f32 %v1321, %v1324
      %v1329 = vmul.f32 %v1320, %v1325
      %1330 = vst [vmem:[#allocation2 + $0x1c0] sm:$0xff] %v1328
      %1331 = vst [vmem:[#allocation2 + $0x1c8] sm:$0xff] %v1329
      %1332 = vrot.lane.b32.xlu0 %v1298, 15
      %v1333 = vpop.permute.xlu0 %1332
      %1334 = vrot.lane.b32.xlu0 %v1299, 15
      %v1335 = vpop.permute.xlu0 %1334
      %v1336 = vsel %vm382, %v1333, %v1335
      %v1337 = vsel %vm382, %v1335, %v1333
      %v1338 = vld [vmem:[%s385] sm:$0x3]
      %v1340 = vperm.slane %v1338, 0
      %v1341 = vperm.slane %v1338, 1
      %v1344 = vmul.f32 %v1337, %v1340
      %v1345 = vmul.f32 %v1336, %v1341
      %1346 = vst [vmem:[#allocation2 + $0x1d0] sm:$0xff] %v1344
      %1347 = vst [vmem:[#allocation2 + $0x1d8] sm:$0xff] %v1345
      %1348 = vrot.lane.b32.xlu0 %v1298, 1
      %v1349 = vpop.permute.xlu0 %1348
      %1350 = vrot.lane.b32.xlu0 %v1299, 1
      %v1351 = vpop.permute.xlu0 %1350
      %v1352 = vsel %vm400, %v1349, %v1351
      %v1353 = vsel %vm400, %v1351, %v1349
      %v1354 = vld [vmem:[%s403] sm:$0x3]
      %v1356 = vperm.slane %v1354, 0
      %v1357 = vperm.slane %v1354, 1
      %v1360 = vmul.f32 %v1353, %v1356
      %v1361 = vmul.f32 %v1352, %v1357
      %1362 = vst [vmem:[#allocation2 + $0x1e0] sm:$0xff] %v1360
      %1363 = vst [vmem:[#allocation2 + $0x1e8] sm:$0xff] %v1361
      %1364 = vst [vmem:[#allocation2 + $0x1f0] sm:$0xff] %v1298
      %1365 = vst [vmem:[#allocation2 + $0x1f8] sm:$0xff] %v1299
      %1366 = vrot.lane.b32.xlu0 %v1298, 127
      %v1367 = vpop.permute.xlu0 %1366
      %1368 = vrot.lane.b32.xlu0 %v1299, 127
      %v1369 = vpop.permute.xlu0 %1368
      %v1370 = vsel %vm420, %v1367, %v1369
      %v1371 = vsel %vm420, %v1369, %v1367
      %v1372 = vld [vmem:[%s423] sm:$0x3]
      %v1374 = vperm.slane %v1372, 0
      %v1375 = vperm.slane %v1372, 1
      %v1378 = vmul.f32 %v1370, %v1374
      %v1379 = vmul.f32 %v1371, %v1375
      %1380 = vst [vmem:[#allocation2 + $0x200] sm:$0xff] %v1378
      %1381 = vst [vmem:[#allocation2 + $0x208] sm:$0xff] %v1379
      %1382 = vrot.lane.b32.xlu0 %v1298, 113
      %v1383 = vpop.permute.xlu0 %1382
      %1384 = vrot.lane.b32.xlu0 %v1299, 113
      %v1385 = vpop.permute.xlu0 %1384
      %v1386 = vsel %vm438, %v1383, %v1385
      %v1387 = vsel %vm438, %v1385, %v1383
      %v1388 = vld [vmem:[%s441] sm:$0x3]
      %v1390 = vperm.slane %v1388, 0
      %v1391 = vperm.slane %v1388, 1
      %v1394 = vmul.f32 %v1386, %v1390
      %v1395 = vmul.f32 %v1387, %v1391
      %1396 = vst [vmem:[#allocation2 + $0x210] sm:$0xff] %v1394
      %1397 = vst [vmem:[#allocation2 + $0x218] sm:$0xff] %v1395
      %1398 = vrot.lane.b32.xlu0 %v1298, 112
      %v1399 = vpop.permute.xlu0 %1398
      %1400 = vrot.lane.b32.xlu0 %v1299, 112
      %v1401 = vpop.permute.xlu0 %1400
      %v1402 = vsel %vm456, %v1399, %v1401
      %v1403 = vsel %vm456, %v1401, %v1399
      %v1404 = vld [vmem:[%s459] sm:$0x3]
      %v1406 = vperm.slane %v1404, 0
      %v1407 = vperm.slane %v1404, 1
      %v1410 = vmul.f32 %v1402, %v1406
      %v1411 = vmul.f32 %v1403, %v1407
      %1412 = vst [vmem:[#allocation2 + $0x220] sm:$0xff] %v1410
      %1413 = vst [vmem:[#allocation2 + $0x228] sm:$0xff] %v1411
      %1414 = vrot.lane.b32.xlu0 %v1298, 111
      %v1415 = vpop.permute.xlu0 %1414
      %1416 = vrot.lane.b32.xlu0 %v1299, 111
      %v1417 = vpop.permute.xlu0 %1416
      %v1418 = vsel %vm474, %v1415, %v1417
      %v1419 = vsel %vm474, %v1417, %v1415
      %v1420 = vld [vmem:[%s477] sm:$0x3]
      %v1422 = vperm.slane %v1420, 0
      %v1423 = vperm.slane %v1420, 1
      %v1426 = vmul.f32 %v1418, %v1422
      %v1427 = vmul.f32 %v1419, %v1423
      %1428 = vst [vmem:[#allocation2 + $0x230] sm:$0xff] %v1426
      %1429 = vst [vmem:[#allocation2 + $0x238] sm:$0xff] %v1427
      %v1430 = vld [vmem:[%s5] sm:$0xff]
      %v1431 = vld [vmem:[%s5 + $0x8] sm:$0xff]
      %v1432 = vld [vmem:[%s5 + $0x10] sm:$0xff]
      %v1433 = vld [vmem:[#allocation2] sm:$0xff]
      %v1434 = vld [vmem:[#allocation2 + $0x8] sm:$0xff]
      %v1435 = vld [vmem:[#allocation2 + $0x10] sm:$0xff]
      %v1436 = vld [vmem:[#allocation2 + $0x18] sm:$0xff]
      %v1437 = vld [vmem:[#allocation2 + $0x20] sm:$0xff]
      %v1438 = vld [vmem:[#allocation2 + $0x28] sm:$0xff]
      %v1439 = vld [vmem:[#allocation2 + $0x30] sm:$0xff]
      %v1440 = vld [vmem:[#allocation2 + $0x38] sm:$0xff]
      %v1441 = vld [vmem:[#allocation2 + $0x40] sm:$0xff]
      %v1442 = vld [vmem:[#allocation2 + $0x48] sm:$0xff]
      %v1443 = vld [vmem:[#allocation2 + $0x50] sm:$0xff]
      %v1444 = vld [vmem:[#allocation2 + $0x58] sm:$0xff]
      %v1445 = vld [vmem:[#allocation2 + $0x60] sm:$0xff]
      %v1446 = vld [vmem:[#allocation2 + $0x68] sm:$0xff]
      %v1447 = vld [vmem:[#allocation2 + $0x70] sm:$0xff]
      %v1448 = vld [vmem:[#allocation2 + $0x78] sm:$0xff]
      %v1449 = vld [vmem:[#allocation2 + $0x80] sm:$0xff]
      %v1450 = vld [vmem:[#allocation2 + $0x88] sm:$0xff]
      %v1451 = vld [vmem:[#allocation2 + $0x90] sm:$0xff]
      %v1452 = vld [vmem:[#allocation2 + $0x98] sm:$0xff]
      %v1453 = vld [vmem:[#allocation2 + $0xa0] sm:$0xff]
      %v1454 = vld [vmem:[#allocation2 + $0xa8] sm:$0xff]
      %v1455 = vld [vmem:[#allocation2 + $0xb0] sm:$0xff]
      %v1456 = vld [vmem:[#allocation2 + $0xb8] sm:$0xff]
      %v1457 = vld [vmem:[#allocation2 + $0xc0] sm:$0xff]
      %v1458 = vld [vmem:[#allocation2 + $0xc8] sm:$0xff]
      %v1459 = vld [vmem:[#allocation2 + $0xd0] sm:$0xff]
      %v1460 = vld [vmem:[#allocation2 + $0xd8] sm:$0xff]
      %v1461 = vld [vmem:[#allocation2 + $0xe0] sm:$0xff]
      %v1462 = vld [vmem:[#allocation2 + $0xe8] sm:$0xff]
      %v1463 = vld [vmem:[#allocation2 + $0xf0] sm:$0xff]
      %v1464 = vld [vmem:[#allocation2 + $0xf8] sm:$0xff]
      %v1465 = vld [vmem:[#allocation2 + $0x100] sm:$0xff]
      %v1466 = vld [vmem:[#allocation2 + $0x108] sm:$0xff]
      %v1467 = vld [vmem:[#allocation2 + $0x110] sm:$0xff]
      %v1468 = vld [vmem:[#allocation2 + $0x118] sm:$0xff]
      %v1469 = vld [vmem:[#allocation2 + $0x120] sm:$0xff]
      %v1470 = vld [vmem:[#allocation2 + $0x128] sm:$0xff]
      %v1471 = vld [vmem:[#allocation2 + $0x130] sm:$0xff]
      %v1472 = vld [vmem:[#allocation2 + $0x138] sm:$0xff]
      %v1473 = vld [vmem:[#allocation2 + $0x140] sm:$0xff]
      %v1474 = vld [vmem:[#allocation2 + $0x148] sm:$0xff]
      %v1475 = vld [vmem:[#allocation2 + $0x150] sm:$0xff]
      %v1476 = vld [vmem:[#allocation2 + $0x158] sm:$0xff]
      %v1477 = vld [vmem:[#allocation2 + $0x160] sm:$0xff]
      %v1478 = vld [vmem:[#allocation2 + $0x168] sm:$0xff]
      %v1479 = vld [vmem:[#allocation2 + $0x170] sm:$0xff]
      %v1480 = vld [vmem:[#allocation2 + $0x178] sm:$0xff]
      %v1481 = vld [vmem:[#allocation2 + $0x180] sm:$0xff]
      %v1482 = vld [vmem:[#allocation2 + $0x188] sm:$0xff]
      %v1483 = vld [vmem:[#allocation2 + $0x190] sm:$0xff]
      %v1484 = vld [vmem:[#allocation2 + $0x198] sm:$0xff]
      %v1485 = vld [vmem:[#allocation2 + $0x1a0] sm:$0xff]
      %v1486 = vld [vmem:[#allocation2 + $0x1a8] sm:$0xff]
      %v1487 = vld [vmem:[#allocation2 + $0x1b0] sm:$0xff]
      %v1488 = vld [vmem:[#allocation2 + $0x1b8] sm:$0xff]
      %v1489 = vld [vmem:[#allocation2 + $0x1c0] sm:$0xff]
      %v1490 = vld [vmem:[#allocation2 + $0x1c8] sm:$0xff]
      %v1491 = vld [vmem:[#allocation2 + $0x1d0] sm:$0xff]
      %v1492 = vld [vmem:[#allocation2 + $0x1d8] sm:$0xff]
      %v1493 = vld [vmem:[#allocation2 + $0x1e0] sm:$0xff]
      %v1494 = vld [vmem:[#allocation2 + $0x1e8] sm:$0xff]
      %v1495 = vld [vmem:[#allocation2 + $0x1f0] sm:$0xff]
      %v1496 = vld [vmem:[#allocation2 + $0x1f8] sm:$0xff]
      %v1497 = vld [vmem:[#allocation2 + $0x200] sm:$0xff]
      %v1498 = vld [vmem:[#allocation2 + $0x208] sm:$0xff]
      %v1499 = vld [vmem:[#allocation2 + $0x210] sm:$0xff]
      %v1500 = vld [vmem:[#allocation2 + $0x218] sm:$0xff]
      %v1501 = vld [vmem:[#allocation2 + $0x220] sm:$0xff]
      %v1502 = vld [vmem:[#allocation2 + $0x228] sm:$0xff]
      %v1503 = vld [vmem:[#allocation2 + $0x230] sm:$0xff]
      %v1504 = vld [vmem:[#allocation2 + $0x238] sm:$0xff]
      %s1505 = scalar_lea.vmem %s6, 32
      %v1506 = vld [vmem:[%s1505] sm:$0xff]
      %1508 = vset.pattern.permute.xlu0 0
      %1509 = vperm.xlu0 %1508, %v1506
      %v1510 = vpop.permute.xlu0 %1509
      %vm1512 = vcmask 261120
      %v1514 = vsel %vm1512, %v1432, 0
      %1516 = vmatpush.msra.mxu0 %v1463
      %1517 = vmatpush.msra.mxu0 %v1461
      %1518 = vmatpush.msra.mxu0 %v1459
      %1519 = vmatpush.msra.mxu0 %v1457
      %1520 = vmatpush.msra.mxu0 %v1455
      %1521 = vmatpush.msra.mxu0 %v1453
      %1522 = vmatpush.msra.mxu0 %v1451
      %1523 = vmatpush.msra.mxu0 %v1449
      %1524 = vmatpush.msra.mxu0 %v1447
      %1525 = vmatpush.msra.mxu0 %v1445
      %1526 = vmatpush.msra.mxu0 %v1443
      %1527 = vmatpush.msra.mxu0 %v1441
      %1528 = vmatpush.msra.mxu0 %v1439
      %1529 = vmatpush.msra.mxu0 %v1437
      %1530 = vmatpush.msra.mxu0 %v1435
      %1531 = vmatpush.msra.mxu0 %v1433
      %1532 = vmatmul.f32.gmra.mxu0 %v1430
      %v1533 = vpop.f32.mrf.mxu0
      %v1534 = vadd.f32 %v1510, %v1533
      %1535 = vdwg.mxu0
      %1536 = vmatpush.msra.mxu0 %v1495
      %1537 = vmatpush.msra.mxu0 %v1493
      %1538 = vmatpush.msra.mxu0 %v1491
      %1539 = vmatpush.msra.mxu0 %v1489
      %1540 = vmatpush.msra.mxu0 %v1487
      %1541 = vmatpush.msra.mxu0 %v1485
      %1542 = vmatpush.msra.mxu0 %v1483
      %1543 = vmatpush.msra.mxu0 %v1481
      %1544 = vmatpush.msra.mxu0 %v1479
      %1545 = vmatpush.msra.mxu0 %v1477
      %1546 = vmatpush.msra.mxu0 %v1475
      %1547 = vmatpush.msra.mxu0 %v1473
      %1548 = vmatpush.msra.mxu0 %v1471
      %1549 = vmatpush.msra.mxu0 %v1469
      %1550 = vmatpush.msra.mxu0 %v1467
      %1551 = vmatpush.msra.mxu0 %v1465
      %1552 = vmatmul.f32.gmra.mxu0 %v1431
      %v1553 = vpop.f32.mrf.mxu0
      %v1554 = vadd.f32 %v1534, %v1553
      %1555 = vdwg.mxu0
      %1556 = vmatpush.msra.mxu0 0.0
      %1557 = vmatpush.msra.mxu0 0.0
      %1558 = vmatpush.msra.mxu0 0.0
      %1559 = vmatpush.msra.mxu0 0.0
      %1560 = vmatpush.msra.mxu0 0.0
      %1561 = vmatpush.msra.mxu0 0.0
      %1562 = vmatpush.msra.mxu0 0.0
      %1563 = vmatpush.msra.mxu0 0.0
      %1564 = vmatpush.msra.mxu0 0.0
      %1565 = vmatpush.msra.mxu0 0.0
      %1566 = vmatpush.msra.mxu0 0.0
      %1567 = vmatpush.msra.mxu0 0.0
      %1568 = vmatpush.msra.mxu0 %v1503
      %1569 = vmatpush.msra.mxu0 %v1501
      %1570 = vmatpush.msra.mxu0 %v1499
      %1571 = vmatpush.msra.mxu0 %v1497
      %1572 = vmatmul.f32.gmra.mxu0 %v1514
      %v1573 = vpop.f32.mrf.mxu0
      %v1574 = vadd.f32 %v1554, %v1573
      %1575 = vdwg.mxu0
      %1576 = vmatpush.msra.mxu0 %v1464
      %1577 = vmatpush.msra.mxu0 %v1462
      %1578 = vmatpush.msra.mxu0 %v1460
      %1579 = vmatpush.msra.mxu0 %v1458
      %1580 = vmatpush.msra.mxu0 %v1456
      %1581 = vmatpush.msra.mxu0 %v1454
      %1582 = vmatpush.msra.mxu0 %v1452
      %1583 = vmatpush.msra.mxu0 %v1450
      %1584 = vmatpush.msra.mxu0 %v1448
      %1585 = vmatpush.msra.mxu0 %v1446
      %1586 = vmatpush.msra.mxu0 %v1444
      %1587 = vmatpush.msra.mxu0 %v1442
      %1588 = vmatpush.msra.mxu0 %v1440
      %1589 = vmatpush.msra.mxu0 %v1438
      %1590 = vmatpush.msra.mxu0 %v1436
      %1591 = vmatpush.msra.mxu0 %v1434
      %1592 = vmatmul.f32.gmra.mxu0 %v1430
      %v1593 = vpop.f32.mrf.mxu0
      %v1594 = vadd.f32 %v1510, %v1593
      %1595 = vdwg.mxu0
      %1596 = vmatpush.msra.mxu0 %v1496
      %1597 = vmatpush.msra.mxu0 %v1494
      %1598 = vmatpush.msra.mxu0 %v1492
      %1599 = vmatpush.msra.mxu0 %v1490
      %1600 = vmatpush.msra.mxu0 %v1488
      %1601 = vmatpush.msra.mxu0 %v1486
      %1602 = vmatpush.msra.mxu0 %v1484
      %1603 = vmatpush.msra.mxu0 %v1482
      %1604 = vmatpush.msra.mxu0 %v1480
      %1605 = vmatpush.msra.mxu0 %v1478
      %1606 = vmatpush.msra.mxu0 %v1476
      %1607 = vmatpush.msra.mxu0 %v1474
      %1608 = vmatpush.msra.mxu0 %v1472
      %1609 = vmatpush.msra.mxu0 %v1470
      %1610 = vmatpush.msra.mxu0 %v1468
      %1611 = vmatpush.msra.mxu0 %v1466
      %1612 = vmatmul.f32.gmra.mxu0 %v1431
      %v1613 = vpop.f32.mrf.mxu0
      %v1614 = vadd.f32 %v1594, %v1613
      %1615 = vdwg.mxu0
      %1616 = vmatpush.msra.mxu0 0.0
      %1617 = vmatpush.msra.mxu0 0.0
      %1618 = vmatpush.msra.mxu0 0.0
      %1619 = vmatpush.msra.mxu0 0.0
      %1620 = vmatpush.msra.mxu0 0.0
      %1621 = vmatpush.msra.mxu0 0.0
      %1622 = vmatpush.msra.mxu0 0.0
      %1623 = vmatpush.msra.mxu0 0.0
      %1624 = vmatpush.msra.mxu0 0.0
      %1625 = vmatpush.msra.mxu0 0.0
      %1626 = vmatpush.msra.mxu0 0.0
      %1627 = vmatpush.msra.mxu0 0.0
      %1628 = vmatpush.msra.mxu0 %v1504
      %1629 = vmatpush.msra.mxu0 %v1502
      %1630 = vmatpush.msra.mxu0 %v1500
      %1631 = vmatpush.msra.mxu0 %v1498
      %1632 = vmatmul.f32.gmra.mxu0 %v1514
      %v1633 = vpop.f32.mrf.mxu0
      %v1634 = vadd.f32 %v1614, %v1633
      %1635 = vdwg.mxu0
      %v1636 = vmax.f32 %v1574, 0.0
      %v1637 = vmax.f32 %v1634, 0.0
      %v1638 = vadd.f32 %v339, %v1636
      %v1639 = vadd.f32 %v340, %v1637
      %1640 = vst [vmem:[#allocation3] sm:$0xff] %v1638
      %1641 = vst [vmem:[#allocation3 + $0x8] sm:$0xff] %v1639
      %1642 = vst [vmem:[%s329] sm:$0xff] %v1638
      %1643 = vst [vmem:[%s329 + $0x8] sm:$0xff] %v1639
      %s1644 = smul.u32 2, %s23
      %p1645 = scmp.lt.s32.totalorder %s24, 2
      %s1646 = scalar_select %p1645, %s24, 2
      %p1647 = scmp.lt.s32.totalorder %s1644, 3
      %s1648 = scalar_select %p1647, %s1644, 3
      %s1649 = smul.addr %s1646, 4
      %s1650 = sadd.s32 %s1648, %s1649
      %s1651 = smul.addr %s1650, 8
      %s1652 = scalar_lea.vmem %s8, %s1651
      // Predicated region
      $region57: #{rrdb_pallas.1} parent=51 // pred_check
        %p1653 = pneg %p224
      $region58: #{rrdb_pallas.1} parent=51 // pred_check_branch
        %1655 = sbr.rel (%p1653) target = $region60
      $region59: #{rrdb_pallas.1} parent=51 // pred_region
        %s1656 = smul.u32 2, %s23
      $region60: #{rrdb_pallas.1} parent=51 // pred_fallthru
        _
    $region52: #{rrdb_pallas.1} parent=5 // pred_fallthru
      _
    %p1657 = scmp.le.s32.totalorder 2, %s14
    // Predicated region
    $region61: #{rrdb_pallas.1} parent=5 // pred_check
      %p1658 = pneg %p1657
    $region62: #{rrdb_pallas.1} parent=5 // pred_check_branch
      %1660 = sbr.rel (%p1658) target = $region64
    $region63: #{rrdb_pallas.1} parent=5 // pred_region
      %s1661 = ssub.s32 %s14, 2
      // Predicated region
      $region65: #{rrdb_pallas.1} parent=63 // pred_check
        %p1662 = pneg %p230
      $region66: #{rrdb_pallas.1} parent=63 // pred_check_branch
        %1664 = sbr.rel (%p1662) target = $region68
      $region67: #{rrdb_pallas.1} parent=63 // pred_region
        %s1665 = smul.u32 2, %s25
        %p1666 = scmp.lt.s32.totalorder %s26, 2
        %s1667 = scalar_select %p1666, %s26, 2
        %p1668 = scmp.lt.s32.totalorder %s1665, 3
        %s1669 = scalar_select %p1668, %s1665, 3
        %s1670 = smul.addr %s1667, 4
        %s1671 = sadd.s32 %s1669, %s1670
        %s1672 = smul.addr %s1671, 8
        %s1673 = scalar_lea.vmem %s8, %s1672
      $region68: #{rrdb_pallas.1} parent=63 // pred_fallthru
        _
    $region64: #{rrdb_pallas.1} parent=5 // pred_fallthru
      _
  $region6: #{rrdb_pallas.1} parent=0 // loop_footer
    %s18 = sadd.s32 1, %s14
  $region7: #{rrdb_pallas.1} parent=0 // loop_footer_branch
    %13 = sbr.rel target = $region3
  $region8: #{rrdb_pallas.1} parent=0 // loop_exit
    _

</llo_original>
